<compile_context>
chip_gen: v5e
topology: v5e:2x2
jax: 0.10.0
libtpu: 0.0.40
codegen_flags: <defaults>
</compile_context>

<pallas_src>
import functools

import jax
import jax.numpy as jnp
from jax import lax
from jax.experimental import pallas as pl
from jax.experimental.pallas import tpu as pltpu


def _rpn_head_kernel(x_ref, wconv_ref, bconv_ref, wheads_ref, bheads_ref,
                     out_ref, *, H, Wp8, C):
    """One batch element per grid step.

    x_ref     : (Hpad*Wp8, 3C) f32   kw-stacked, zero-padded, flattened NHWC
                                     (Hpad = H+2, Wp8 = W+2 rounded up to 8)
    wconv_ref : (3, 3C, C)    f32    3x3 conv weights, kh-major, kw stacked on K
    bconv_ref : (1, C)        f32
    wheads_ref: (C, 5A)       f32    fused [cls | box] 1x1 weights
    bheads_ref: (1, 5A)       f32
    out_ref   : (H*Wp8, 5A)   f32    includes garbage border columns (dropped
                                     by an XLA slice in the wrapper)
    """
    M = H * Wp8

    # 3x3 conv = 3 sublane-aligned row-shifted matmuls with K = 3C.
    # Tap row kh contributes x_flat[j + kh*Wp8] @ w[kh] to output row j.
    acc = jnp.dot(x_ref[pl.ds(0, M), :], wconv_ref[0],
                  preferred_element_type=jnp.float32)
    acc = acc + jnp.dot(x_ref[pl.ds(Wp8, M), :], wconv_ref[1],
                        preferred_element_type=jnp.float32)
    acc = acc + jnp.dot(x_ref[pl.ds(2 * Wp8, M), :], wconv_ref[2],
                        preferred_element_type=jnp.float32)

    # Bias + ReLU, then fused cls|box 1x1 heads: one (M, C) x (C, 5A) matmul.
    t = jnp.maximum(acc + bconv_ref[...], 0.0)
    out_ref[...] = jnp.dot(t, wheads_ref[...],
                           preferred_element_type=jnp.float32) + bheads_ref[...]


def rpn_head_level(x_nchw, params):
    """RPN head on one feature level.

    x_nchw: (N, C, H, W) float32 (PyTorch layout)
    returns: (objectness (N, A, H, W), bbox_reg (N, 4A, H, W))
    """
    w_conv, b_conv, w_cls, b_cls, w_box, b_box = params
    N, C, H, W = x_nchw.shape
    A = w_cls.shape[1]
    FA = 5 * A
    Wp8 = ((W + 2 + 7) // 8) * 8          # padded row width, multiple of 8
    Hpad = H + 2                          # 1 top + 1 bottom pad row
    pad_right = Wp8 - W + 1               # padded image width = Wp8 + 2

    # Weight prep (tiny): kw taps stacked along K for each kh; fuse the heads.
    w_conv_k = w_conv.reshape(3, 3, C, C).reshape(3, 3 * C, C)   # (3, 3C, C)
    w_heads = jnp.concatenate([w_cls, w_box], axis=1)            # (C, 5A)
    b_heads = jnp.concatenate([b_cls, b_box], axis=1)            # (1, 5A)

    # NCHW -> NHWC, zero-pad, stack kw-shifted copies on channels, flatten:
    # one fused XLA copy producing (N, Hpad*Wp8, 3C).
    x = jnp.transpose(x_nchw, (0, 2, 3, 1))
    xpad = jnp.pad(x, ((0, 0), (1, 1), (1, pad_right), (0, 0)))
    xs = jnp.concatenate([xpad[:, :, kw:kw + Wp8, :] for kw in range(3)],
                         axis=-1)
    xflat = xs.reshape(N, Hpad * Wp8, 3 * C)

    kernel = functools.partial(_rpn_head_kernel, H=H, Wp8=Wp8, C=C)

    combined = pl.pallas_call(
        kernel,
        out_shape=jax.ShapeDtypeStruct((N, H * Wp8, FA), jnp.float32),
        grid=(N,),
        in_specs=[
            pl.BlockSpec((None, Hpad * Wp8, 3 * C), lambda n: (n, 0, 0)),
            pl.BlockSpec((3, 3 * C, C), lambda n: (0, 0, 0)),
            pl.BlockSpec((1, C), lambda n: (0, 0)),
            pl.BlockSpec((C, FA), lambda n: (0, 0)),
            pl.BlockSpec((1, FA), lambda n: (0, 0)),
        ],
        out_specs=pl.BlockSpec((None, H * Wp8, FA), lambda n: (n, 0, 0)),
        compiler_params=pltpu.CompilerParams(
            dimension_semantics=("parallel",),
            vmem_limit_bytes=32 * 1024 * 1024,
        ),
    )(xflat, w_conv_k, b_conv, w_heads, b_heads)

    # Wrapper-side epilogue (cheap XLA ops): drop garbage border columns,
    # transpose to NCHW, split into the two heads.
    out = combined.reshape(N, H, Wp8, FA)[:, :, :W, :]
    out_nchw = jnp.transpose(out, (0, 3, 1, 2))          # (N, 5A, H, W)
    objectness = out_nchw[:, :A]
    bbox_reg = out_nchw[:, A:]
    return objectness, bbox_reg


def rpn_module_forward(features, params):
    """RPNModule.forward head path: per-level (logits, bbox_reg) lists."""
    logits, bbox_reg = [], []
    for feat in features:
        o, b = rpn_head_level(feat, params)
        logits.append(o)
        bbox_reg.append(b)
    return logits, bbox_reg


def _reference_level(x_nchw, params):
    """Pure-JAX f32 reference for one level."""
    w_conv, b_conv, w_cls, b_cls, w_box, b_box = params
    N, C, H, W = x_nchw.shape
    A = w_cls.shape[1]
    w3 = w_conv.reshape(3, 3, C, C)                          # HWIO
    x = jnp.transpose(x_nchw, (0, 2, 3, 1))                  # NHWC
    dn = lax.conv_dimension_numbers(x.shape, w3.shape, ("NHWC", "HWIO", "NHWC"))
    t = lax.conv_general_dilated(x, w3, (1, 1), "SAME", dimension_numbers=dn)
    t = jnp.maximum(t + b_conv.reshape(1, 1, 1, C), 0.0)
    cls = jnp.einsum("nhwc,ca->nahw", t, w_cls) + b_cls.reshape(1, A, 1, 1)
    box = jnp.einsum("nhwc,ca->nahw", t, w_box) + b_box.reshape(1, 4 * A, 1, 1)
    return cls, box


def init_rpn_params(key, inplanes, num_anchors):
    """Deterministic init matching RPNPredictor.__init__ (normal std=0.01, bias 0)."""
    k1, k2, k3 = jax.random.split(key, 3)
    w_conv = 0.01 * jax.random.normal(k1, (9, inplanes, inplanes), jnp.float32)
    b_conv = jnp.zeros((1, inplanes), jnp.float32)
    w_cls = 0.01 * jax.random.normal(k2, (inplanes, num_anchors), jnp.float32)
    b_cls = jnp.zeros((1, num_anchors), jnp.float32)
    w_box = 0.01 * jax.random.normal(k3, (inplanes, 4 * num_anchors), jnp.float32)
    b_box = jnp.zeros((1, 4 * num_anchors), jnp.float32)
    return (w_conv, b_conv, w_cls, b_cls, w_box, b_box)


if __name__ == "__main__":
    key = jax.random.PRNGKey(0)
    kp, kf1, kf2 = jax.random.split(key, 3)

    N = 2          # batch
    C = 32         # cfg.MODEL.BACKBONE.OUT_CHANNELS (small synthetic value)
    A = 3          # num_anchors_per_location

    params = init_rpn_params(kp, C, A)

    # Two FPN-like feature levels, NCHW like PyTorch.
    features = [
        jax.random.normal(kf1, (N, C, 16, 16), jnp.float32),
        jax.random.normal(kf2, (N, C, 8, 8), jnp.float32),
    ]

    logits, bbox_reg = rpn_module_forward(features, params)
    jax.block_until_ready((logits, bbox_reg))

    ok = True
    for feat, o, b in zip(features, logits, bbox_reg):
        o_ref, b_ref = _reference_level(feat, params)
        ok &= bool(jnp.allclose(o, o_ref, atol=1e-3, rtol=1e-3))
        ok &= bool(jnp.allclose(b, b_ref, atol=1e-3, rtol=1e-3))
        assert o.shape == (N, A, feat.shape[2], feat.shape[3])
        assert b.shape == (N, 4 * A, feat.shape[2], feat.shape[3])

    print("KERNEL_OK" if ok else "KERNEL_MISMATCH")
</pallas_src>

<mosaic_0001>
module attributes {stable_mosaic.version = 11 : i64} {
  func.func @_rpn_head_kernel(%arg0: i32, %arg1: memref<1x432x96xf32, #tpu.memory_space<vmem>>, %arg2: memref<3x96x32xf32, #tpu.memory_space<vmem>>, %arg3: memref<1x32xf32, #tpu.memory_space<vmem>>, %arg4: memref<32x15xf32, #tpu.memory_space<vmem>>, %arg5: memref<1x15xf32, #tpu.memory_space<vmem>>, %arg6: memref<1x384x15xf32, #tpu.memory_space<vmem>>) attributes {dimension_semantics = [#tpu.dimension_semantics<parallel>], iteration_bounds = array<i64: 2>, scalar_prefetch = 0 : i64, scratch_operands = 0 : i64, tpu.core_type = #tpu.core_type<tc>, window_params = [{transform_indices = @transform_0, window_bounds = array<i64: 1, 432, 96>}, {pipeline_mode = #tpu.pipeline_mode<synchronous>, transform_indices = @transform_1, window_bounds = array<i64: 3, 96, 32>}, {pipeline_mode = #tpu.pipeline_mode<synchronous>, transform_indices = @transform_2, window_bounds = array<i64: 1, 32>}, {pipeline_mode = #tpu.pipeline_mode<synchronous>, transform_indices = @transform_3, window_bounds = array<i64: 32, 15>}, {pipeline_mode = #tpu.pipeline_mode<synchronous>, transform_indices = @transform_4, window_bounds = array<i64: 1, 15>}, {transform_indices = @transform_5, window_bounds = array<i64: 1, 384, 15>}]} {
    %c0 = arith.constant 0 : index
    %c0_0 = arith.constant 0 : index
    %c0_1 = arith.constant 0 : index
    %0 = vector.load %arg1[%c0, %c0_0, %c0_1] : memref<1x432x96xf32, #tpu.memory_space<vmem>>, vector<1x384x96xf32>
    %1 = vector.shape_cast %0 : vector<1x384x96xf32> to vector<384x96xf32>
    %c0_2 = arith.constant 0 : index
    %c0_3 = arith.constant 0 : index
    %c0_4 = arith.constant 0 : index
    %2 = vector.load %arg2[%c0_2, %c0_3, %c0_4] : memref<3x96x32xf32, #tpu.memory_space<vmem>>, vector<1x96x32xf32>
    %3 = vector.shape_cast %2 : vector<1x96x32xf32> to vector<96x32xf32>
    %cst = arith.constant dense<0.000000e+00> : vector<384x32xf32>
    %4 = tpu.matmul %1, %3, %cst {dimension_numbers = #tpu.dot_dimension_numbers<[1], [0], [0], [1], [0, 0, 1, 1], [], []>} : vector<384x96xf32>, vector<96x32xf32>, vector<384x32xf32> -> vector<384x32xf32>
    %c0_5 = arith.constant 0 : index
    %c24 = arith.constant 24 : index
    %c0_6 = arith.constant 0 : index
    %5 = vector.load %arg1[%c0_5, %c24, %c0_6] : memref<1x432x96xf32, #tpu.memory_space<vmem>>, vector<1x384x96xf32>
    %6 = vector.shape_cast %5 : vector<1x384x96xf32> to vector<384x96xf32>
    %c1 = arith.constant 1 : index
    %c0_7 = arith.constant 0 : index
    %c0_8 = arith.constant 0 : index
    %7 = vector.load %arg2[%c1, %c0_7, %c0_8] : memref<3x96x32xf32, #tpu.memory_space<vmem>>, vector<1x96x32xf32>
    %8 = vector.shape_cast %7 : vector<1x96x32xf32> to vector<96x32xf32>
    %cst_9 = arith.constant dense<0.000000e+00> : vector<384x32xf32>
    %9 = tpu.matmul %6, %8, %cst_9 {dimension_numbers = #tpu.dot_dimension_numbers<[1], [0], [0], [1], [0, 0, 1, 1], [], []>} : vector<384x96xf32>, vector<96x32xf32>, vector<384x32xf32> -> vector<384x32xf32>
    %10 = arith.addf %4, %9 : vector<384x32xf32>
    %c0_10 = arith.constant 0 : index
    %c48 = arith.constant 48 : index
    %c0_11 = arith.constant 0 : index
    %11 = vector.load %arg1[%c0_10, %c48, %c0_11] : memref<1x432x96xf32, #tpu.memory_space<vmem>>, vector<1x384x96xf32>
    %12 = vector.shape_cast %11 : vector<1x384x96xf32> to vector<384x96xf32>
    %c2 = arith.constant 2 : index
    %c0_12 = arith.constant 0 : index
    %c0_13 = arith.constant 0 : index
    %13 = vector.load %arg2[%c2, %c0_12, %c0_13] : memref<3x96x32xf32, #tpu.memory_space<vmem>>, vector<1x96x32xf32>
    %14 = vector.shape_cast %13 : vector<1x96x32xf32> to vector<96x32xf32>
    %cst_14 = arith.constant dense<0.000000e+00> : vector<384x32xf32>
    %15 = tpu.matmul %12, %14, %cst_14 {dimension_numbers = #tpu.dot_dimension_numbers<[1], [0], [0], [1], [0, 0, 1, 1], [], []>} : vector<384x96xf32>, vector<96x32xf32>, vector<384x32xf32> -> vector<384x32xf32>
    %16 = arith.addf %10, %15 : vector<384x32xf32>
    %c0_15 = arith.constant 0 : index
    %c0_16 = arith.constant 0 : index
    %17 = vector.load %arg3[%c0_15, %c0_16] : memref<1x32xf32, #tpu.memory_space<vmem>>, vector<1x32xf32>
    %18 = vector.broadcast %17 : vector<1x32xf32> to vector<384x32xf32>
    %19 = arith.addf %16, %18 : vector<384x32xf32>
    %cst_17 = arith.constant 0.000000e+00 : f32
    %20 = vector.broadcast %cst_17 : f32 to vector<384x32xf32>
    %21 = arith.maximumf %19, %20 : vector<384x32xf32>
    %c0_18 = arith.constant 0 : index
    %c0_19 = arith.constant 0 : index
    %22 = vector.load %arg4[%c0_18, %c0_19] : memref<32x15xf32, #tpu.memory_space<vmem>>, vector<32x15xf32>
    %cst_20 = arith.constant dense<0.000000e+00> : vector<384x15xf32>
    %23 = tpu.matmul %21, %22, %cst_20 {dimension_numbers = #tpu.dot_dimension_numbers<[1], [0], [0], [1], [0, 0, 1, 1], [], []>} : vector<384x32xf32>, vector<32x15xf32>, vector<384x15xf32> -> vector<384x15xf32>
    %c0_21 = arith.constant 0 : index
    %c0_22 = arith.constant 0 : index
    %24 = vector.load %arg5[%c0_21, %c0_22] : memref<1x15xf32, #tpu.memory_space<vmem>>, vector<1x15xf32>
    %25 = vector.broadcast %24 : vector<1x15xf32> to vector<384x15xf32>
    %26 = arith.addf %23, %25 : vector<384x15xf32>
    %c0_23 = arith.constant 0 : index
    %c0_24 = arith.constant 0 : index
    %c0_25 = arith.constant 0 : index
    %27 = vector.load %arg6[%c0_23, %c0_24, %c0_25] : memref<1x384x15xf32, #tpu.memory_space<vmem>>, vector<1x384x15xf32>
    %28 = vector.shape_cast %27 : vector<1x384x15xf32> to vector<384x15xf32>
    %29 = vector.shape_cast %26 : vector<384x15xf32> to vector<1x384x15xf32>
    tpu.vector_store %arg6[%c0_23, %c0_24, %c0_25], %29 {strides = array<i32>} : memref<1x384x15xf32, #tpu.memory_space<vmem>>, vector<1x384x15xf32>,
    return
  }
  func.func @transform_0(%arg0: i32) -> (i32, i32, i32) {
    %c0_i32 = arith.constant 0 : i32
    %c0_i32_0 = arith.constant 0 : i32
    %c0_i32_1 = arith.constant 0 : i32
    return %arg0, %c0_i32, %c0_i32_0 : i32, i32, i32
  }
  func.func @transform_1(%arg0: i32) -> (i32, i32, i32) {
    %c0_i32 = arith.constant 0 : i32
    %c0_i32_0 = arith.constant 0 : i32
    %c0_i32_1 = arith.constant 0 : i32
    %c0_i32_2 = arith.constant 0 : i32
    return %c0_i32, %c0_i32_0, %c0_i32_1 : i32, i32, i32
  }
  func.func @transform_2(%arg0: i32) -> (i32, i32) {
    %c0_i32 = arith.constant 0 : i32
    %c0_i32_0 = arith.constant 0 : i32
    %c0_i32_1 = arith.constant 0 : i32
    return %c0_i32, %c0_i32_0 : i32, i32
  }
  func.func @transform_3(%arg0: i32) -> (i32, i32) {
    %c0_i32 = arith.constant 0 : i32
    %c0_i32_0 = arith.constant 0 : i32
    %c0_i32_1 = arith.constant 0 : i32
    return %c0_i32, %c0_i32_0 : i32, i32
  }
  func.func @transform_4(%arg0: i32) -> (i32, i32) {
    %c0_i32 = arith.constant 0 : i32
    %c0_i32_0 = arith.constant 0 : i32
    %c0_i32_1 = arith.constant 0 : i32
    return %c0_i32, %c0_i32_0 : i32, i32
  }
  func.func @transform_5(%arg0: i32) -> (i32, i32, i32) {
    %c0_i32 = arith.constant 0 : i32
    %c0_i32_0 = arith.constant 0 : i32
    %c0_i32_1 = arith.constant 0 : i32
    return %arg0, %c0_i32, %c0_i32_0 : i32, i32, i32
  }
}

</mosaic_0001>

<llo_original>
// kernel: tpu_custom_call.1
$region0: #{tpu_custom_call.1}
  #allocation0 [shape = 'u32[]', space=smem, size = 0x4, offset = 0x4, fixed_abs, tag = 'smem constant byte address 0x4 - core index']
  #allocation1 [shape = 'u32[72,128]{1,0:T(1,128)}', space=vmem, size = 0x9000, scoped, tag = 'internal scratch']
  %s0 = inlined_call_operand.vmem [shape: f32[2,432,96], index: 0, kind: input, shape index: {}]
  %s1 = inlined_call_operand.vmem [shape: f32[3,96,32], index: 1, kind: input, shape index: {}]
  %s2 = inlined_call_operand.vmem [shape: f32[1,32], index: 2, kind: input, shape index: {}]
  %s3 = inlined_call_operand.vmem [shape: f32[32,15], index: 3, kind: input, shape index: {}]
  %s4 = inlined_call_operand.vmem [shape: f32[1,15], index: 4, kind: input, shape index: {}]
  %s5 = inlined_call_operand.vmem [shape: f32[2,384,15], index: 5, kind: output, shape index: {}]
  %s6 = sld [smem:[#allocation0]]
  $region53: #{tpu_custom_call.1} parent=0
    _
  %s8 = ssub.s32 1, %s6
  %s9 = scalar_select 0, %s8, %s6
  loop: start=0, step=1, limit=4
  $region2: #{tpu_custom_call.1} parent=0 // loop_pre_header
    _
  $region3: #{tpu_custom_call.1} parent=0 // loop_header
    %s11 = sphi 0, %s15
    %p12 = scmp.ge.s32.totalorder %s11, 4
    %s21 = sphi 0, %s23
    %s24 = sphi 0, %s21
    %s25 = sphi 0, %s24
    %s41 = sphi 0, %s25
    %s45 = sphi 0, %s45
    %s47 = sphi 0, %s45
    %s48 = sphi 0, %s47
    %s62 = sphi 0, %s48
    %s66 = sphi 0, %s66
    %s68 = sphi 0, %s66
    %s69 = sphi 0, %s68
    %s83 = sphi 0, %s69
    %s87 = sphi 0, %s87
    %s89 = sphi 0, %s87
    %s90 = sphi 0, %s89
    %s104 = sphi 0, %s90
    %s108 = sphi 0, %s108
    %s110 = sphi 0, %s108
    %s111 = sphi 0, %s110
    %s125 = sphi 0, %s111
    %s131 = sphi 0, %s133
    %s134 = sphi 0, %s131
    %s135 = sphi 0, %s134
    %s151 = sphi 0, %s135
  $region4: #{tpu_custom_call.1} parent=0 // loop_header_branch
    %14 = sbr.rel (%p12) target = $region8
  $region5: #{tpu_custom_call.1} parent=0 // loop_body
    %s16 = ssub.s32 %s11, 1
    %s17 = ssub.s32 %s11, 2
    %s18 = sadd.s32 %s11, 1
    %s19 = ssub.s32 %s11, %s18
    %p20 = scmp.eq.s32.totalorder %s19, 0
    %s22 = sadd.s32 %s21, 1
    %s23 = scalar_select %p20, %s21, %s22
    %p26 = pneg %p20
    %p27 = scmp.eq.s32.totalorder %s11, 1
    %p28 = por %p26, %p27
    %p29 = scmp.ne.s32.totalorder %s21, %s24
    %p30 = scmp.eq.s32.totalorder %s11, 0
    %p31 = por %p29, %p30
    %p32 = scmp.ne.s32.totalorder %s21, %s24
    %p33 = scmp.eq.s32.totalorder %s16, 1
    %p34 = por %p32, %p33
    %p35 = scmp.ne.s32.totalorder %s24, %s25
    %p36 = scmp.eq.s32.totalorder %s16, 0
    %p37 = por %p35, %p36
    %p38 = scmp.ne.s32.totalorder %s24, %s25
    %p39 = scmp.eq.s32.totalorder %s17, 1
    %p40 = por %p38, %p39
    %p42 = scmp.ne.s32.totalorder %s25, %s41
    %p43 = scmp.eq.s32.totalorder %s17, 0
    %p44 = por %p42, %p43
    %s46 = sadd.s32 %s45, 1
    %p49 = scmp.eq.s32.totalorder %s11, 1
    %p50 = scmp.ne.s32.totalorder %s45, %s47
    %p51 = scmp.eq.s32.totalorder %s11, 0
    %p52 = por %p50, %p51
    %p53 = scmp.ne.s32.totalorder %s45, %s47
    %p54 = scmp.eq.s32.totalorder %s16, 1
    %p55 = por %p53, %p54
    %p56 = scmp.ne.s32.totalorder %s47, %s48
    %p57 = scmp.eq.s32.totalorder %s16, 0
    %p58 = por %p56, %p57
    %p59 = scmp.ne.s32.totalorder %s47, %s48
    %p60 = scmp.eq.s32.totalorder %s17, 1
    %p61 = por %p59, %p60
    %p63 = scmp.ne.s32.totalorder %s48, %s62
    %p64 = scmp.eq.s32.totalorder %s17, 0
    %p65 = por %p63, %p64
    %s67 = sadd.s32 %s66, 1
    %p70 = scmp.eq.s32.totalorder %s11, 1
    %p71 = scmp.ne.s32.totalorder %s66, %s68
    %p72 = scmp.eq.s32.totalorder %s11, 0
    %p73 = por %p71, %p72
    %p74 = scmp.ne.s32.totalorder %s66, %s68
    %p75 = scmp.eq.s32.totalorder %s16, 1
    %p76 = por %p74, %p75
    %p77 = scmp.ne.s32.totalorder %s68, %s69
    %p78 = scmp.eq.s32.totalorder %s16, 0
    %p79 = por %p77, %p78
    %p80 = scmp.ne.s32.totalorder %s68, %s69
    %p81 = scmp.eq.s32.totalorder %s17, 1
    %p82 = por %p80, %p81
    %p84 = scmp.ne.s32.totalorder %s69, %s83
    %p85 = scmp.eq.s32.totalorder %s17, 0
    %p86 = por %p84, %p85
    %s88 = sadd.s32 %s87, 1
    %p91 = scmp.eq.s32.totalorder %s11, 1
    %p92 = scmp.ne.s32.totalorder %s87, %s89
    %p93 = scmp.eq.s32.totalorder %s11, 0
    %p94 = por %p92, %p93
    %p95 = scmp.ne.s32.totalorder %s87, %s89
    %p96 = scmp.eq.s32.totalorder %s16, 1
    %p97 = por %p95, %p96
    %p98 = scmp.ne.s32.totalorder %s89, %s90
    %p99 = scmp.eq.s32.totalorder %s16, 0
    %p100 = por %p98, %p99
    %p101 = scmp.ne.s32.totalorder %s89, %s90
    %p102 = scmp.eq.s32.totalorder %s17, 1
    %p103 = por %p101, %p102
    %p105 = scmp.ne.s32.totalorder %s90, %s104
    %p106 = scmp.eq.s32.totalorder %s17, 0
    %p107 = por %p105, %p106
    %s109 = sadd.s32 %s108, 1
    %p112 = scmp.eq.s32.totalorder %s11, 1
    %p113 = scmp.ne.s32.totalorder %s108, %s110
    %p114 = scmp.eq.s32.totalorder %s11, 0
    %p115 = por %p113, %p114
    %p116 = scmp.ne.s32.totalorder %s108, %s110
    %p117 = scmp.eq.s32.totalorder %s16, 1
    %p118 = por %p116, %p117
    %p119 = scmp.ne.s32.totalorder %s110, %s111
    %p120 = scmp.eq.s32.totalorder %s16, 0
    %p121 = por %p119, %p120
    %p122 = scmp.ne.s32.totalorder %s110, %s111
    %p123 = scmp.eq.s32.totalorder %s17, 1
    %p124 = por %p122, %p123
    %p126 = scmp.ne.s32.totalorder %s111, %s125
    %p127 = scmp.eq.s32.totalorder %s17, 0
    %p128 = por %p126, %p127
    %s129 = ssub.s32 %s11, %s18
    %p130 = scmp.eq.s32.totalorder %s129, 0
    %s132 = sadd.s32 %s131, 1
    %s133 = scalar_select %p130, %s131, %s132
    %p136 = pneg %p130
    %p137 = scmp.eq.s32.totalorder %s11, 1
    %p138 = por %p136, %p137
    %p139 = scmp.ne.s32.totalorder %s131, %s134
    %p140 = scmp.eq.s32.totalorder %s11, 0
    %p141 = por %p139, %p140
    %p142 = scmp.ne.s32.totalorder %s131, %s134
    %p143 = scmp.eq.s32.totalorder %s16, 1
    %p144 = por %p142, %p143
    %p145 = scmp.ne.s32.totalorder %s134, %s135
    %p146 = scmp.eq.s32.totalorder %s16, 0
    %p147 = por %p145, %p146
    %p148 = scmp.ne.s32.totalorder %s134, %s135
    %p149 = scmp.eq.s32.totalorder %s17, 1
    %p150 = por %p148, %p149
    %p152 = scmp.ne.s32.totalorder %s135, %s151
    %p153 = scmp.eq.s32.totalorder %s17, 0
    %p154 = por %p152, %p153
    %p155 = scmp.le.s32.totalorder 1, %s11
    %p156 = scmp.lt.s32.totalorder %s11, 3
    %p157 = pnand %p155, %p156
    %p158 = pneg %p157
    // Predicated region
    $region9: #{tpu_custom_call.1} parent=5 // pred_check
      _
    $region10: #{tpu_custom_call.1} parent=5 // pred_check_branch
      %160 = sbr.rel (%p157) target = $region12
    $region11: #{tpu_custom_call.1} parent=5 // pred_region
      %s161 = ssub.s32 %s11, 1
      // Predicated region
      $region13: #{tpu_custom_call.1} parent=11 // pred_check
        %p162 = pneg %p58
      $region14: #{tpu_custom_call.1} parent=11 // pred_check_branch
        %164 = sbr.rel (%p162) target = $region16
      $region15: #{tpu_custom_call.1} parent=11 // pred_region
        _
      $region16: #{tpu_custom_call.1} parent=11 // pred_fallthru
        _
      // Predicated region
      $region17: #{tpu_custom_call.1} parent=11 // pred_check
        %p165 = pneg %p79
      $region18: #{tpu_custom_call.1} parent=11 // pred_check_branch
        %167 = sbr.rel (%p165) target = $region20
      $region19: #{tpu_custom_call.1} parent=11 // pred_region
        _
      $region20: #{tpu_custom_call.1} parent=11 // pred_fallthru
        _
      // Predicated region
      $region21: #{tpu_custom_call.1} parent=11 // pred_check
        %p168 = pneg %p100
      $region22: #{tpu_custom_call.1} parent=11 // pred_check_branch
        %170 = sbr.rel (%p168) target = $region24
      $region23: #{tpu_custom_call.1} parent=11 // pred_region
        _
      $region24: #{tpu_custom_call.1} parent=11 // pred_fallthru
        _
      // Predicated region
      $region25: #{tpu_custom_call.1} parent=11 // pred_check
        %p171 = pneg %p121
      $region26: #{tpu_custom_call.1} parent=11 // pred_check_branch
        %173 = sbr.rel (%p171) target = $region28
      $region27: #{tpu_custom_call.1} parent=11 // pred_region
        _
      $region28: #{tpu_custom_call.1} parent=11 // pred_fallthru
        _
    $region12: #{tpu_custom_call.1} parent=5 // pred_fallthru
      _
    %p174 = scmp.lt.s32.totalorder %s11, 2
    // Predicated region
    $region29: #{tpu_custom_call.1} parent=5 // pred_check
      %p175 = pneg %p174
    $region30: #{tpu_custom_call.1} parent=5 // pred_check_branch
      %177 = sbr.rel (%p175) target = $region32
    $region31: #{tpu_custom_call.1} parent=5 // pred_region
      // Predicated region
      $region33: #{tpu_custom_call.1} parent=31 // pred_check
        %p178 = pneg %p31
      $region34: #{tpu_custom_call.1} parent=31 // pred_check_branch
        %180 = sbr.rel (%p178) target = $region36
      $region35: #{tpu_custom_call.1} parent=31 // pred_region
        %p181 = scmp.lt.s32.totalorder %s11, 1
        %s182 = scalar_select %p181, %s11, 1
        %s183 = smul.addr %s182, 54
        %s184 = smul.addr %s183, 8
        %s185 = scalar_lea.vmem %s0, %s184
      $region36: #{tpu_custom_call.1} parent=31 // pred_fallthru
        _
    $region32: #{tpu_custom_call.1} parent=5 // pred_fallthru
      _
    %p186 = scmp.le.s32.totalorder 1, %s11
    %p187 = scmp.lt.s32.totalorder %s11, 3
    %p188 = pnand %p186, %p187
    %p189 = pneg %p188
    // Predicated region
    $region37: #{tpu_custom_call.1} parent=5 // pred_check
      _
    $region38: #{tpu_custom_call.1} parent=5 // pred_check_branch
      %191 = sbr.rel (%p188) target = $region40
    $region39: #{tpu_custom_call.1} parent=5 // pred_region
      %s192 = ssub.s32 %s11, 1
      %p193 = scmp.lt.s32.totalorder %s16, 1
      %s194 = scalar_select %p193, %s16, 1
      %s195 = smul.addr %s194, 54
      %s196 = smul.addr %s195, 8
      %s197 = scalar_lea.vmem %s0, %s196
      %p198 = pneg %p37
      %p199 = pneg %p34
      %p200 = pneg %p58
      %p201 = pneg %p55
      %p202 = pneg %p79
      %p203 = pneg %p76
      %p204 = pneg %p100
      %p205 = pneg %p97
      %p206 = pneg %p121
      %p207 = pneg %p118
      %p208 = pneg %p147
      %p209 = pneg %p144
      %p210 = scmp.lt.s32.totalorder %s16, 1
      %s211 = scalar_select %p210, %s16, 1
      %s212 = smul.addr %s211, 48
      %s213 = smul.addr %s212, 8
      %s214 = scalar_lea.vmem %s5, %s213
      %p215 = scmp.lt.s32.totalorder %s16, 1
      %s216 = scalar_select %p215, %s16, 1
      %s217 = smul.addr %s216, 54
      %s218 = smul.addr %s217, 8
      %s219 = scalar_lea.vmem %s0, %s218
      %p220 = scmp.lt.s32.totalorder %s16, 1
      %s221 = scalar_select %p220, %s16, 1
      %s222 = smul.addr %s221, 48
      %s223 = smul.addr %s222, 8
      %s224 = scalar_lea.vmem %s5, %s223
      %v225 = vld [vmem:[%s219] sm:$0xff]
      %v226 = vld [vmem:[%s219 + $0x8] sm:$0xff]
      %v227 = vld [vmem:[%s219 + $0x10] sm:$0xff]
      %v228 = vld [vmem:[%s219 + $0x18] sm:$0xff]
      %v229 = vld [vmem:[%s219 + $0x20] sm:$0xff]
      %v230 = vld [vmem:[%s219 + $0x28] sm:$0xff]
      %v231 = vld [vmem:[%s219 + $0x30] sm:$0xff]
      %v232 = vld [vmem:[%s219 + $0x38] sm:$0xff]
      %v233 = vld [vmem:[%s219 + $0x40] sm:$0xff]
      %v234 = vld [vmem:[%s219 + $0x48] sm:$0xff]
      %v235 = vld [vmem:[%s219 + $0x50] sm:$0xff]
      %v236 = vld [vmem:[%s219 + $0x58] sm:$0xff]
      %v237 = vld [vmem:[%s219 + $0x60] sm:$0xff]
      %v238 = vld [vmem:[%s219 + $0x68] sm:$0xff]
      %v239 = vld [vmem:[%s219 + $0x70] sm:$0xff]
      %v240 = vld [vmem:[%s219 + $0x78] sm:$0xff]
      %v241 = vld [vmem:[%s219 + $0x80] sm:$0xff]
      %v242 = vld [vmem:[%s219 + $0x88] sm:$0xff]
      %v243 = vld [vmem:[%s219 + $0x90] sm:$0xff]
      %v244 = vld [vmem:[%s219 + $0x98] sm:$0xff]
      %v245 = vld [vmem:[%s219 + $0xa0] sm:$0xff]
      %v246 = vld [vmem:[%s219 + $0xa8] sm:$0xff]
      %v247 = vld [vmem:[%s219 + $0xb0] sm:$0xff]
      %v248 = vld [vmem:[%s219 + $0xb8] sm:$0xff]
      %v249 = vld [vmem:[%s219 + $0xc0] sm:$0xff]
      %v250 = vld [vmem:[%s219 + $0xc8] sm:$0xff]
      %v251 = vld [vmem:[%s219 + $0xd0] sm:$0xff]
      %v252 = vld [vmem:[%s219 + $0xd8] sm:$0xff]
      %v253 = vld [vmem:[%s219 + $0xe0] sm:$0xff]
      %v254 = vld [vmem:[%s219 + $0xe8] sm:$0xff]
      %v255 = vld [vmem:[%s219 + $0xf0] sm:$0xff]
      %v256 = vld [vmem:[%s219 + $0xf8] sm:$0xff]
      %v257 = vld [vmem:[%s219 + $0x100] sm:$0xff]
      %v258 = vld [vmem:[%s219 + $0x108] sm:$0xff]
      %v259 = vld [vmem:[%s219 + $0x110] sm:$0xff]
      %v260 = vld [vmem:[%s219 + $0x118] sm:$0xff]
      %v261 = vld [vmem:[%s219 + $0x120] sm:$0xff]
      %v262 = vld [vmem:[%s219 + $0x128] sm:$0xff]
      %v263 = vld [vmem:[%s219 + $0x130] sm:$0xff]
      %v264 = vld [vmem:[%s219 + $0x138] sm:$0xff]
      %v265 = vld [vmem:[%s219 + $0x140] sm:$0xff]
      %v266 = vld [vmem:[%s219 + $0x148] sm:$0xff]
      %v267 = vld [vmem:[%s219 + $0x150] sm:$0xff]
      %v268 = vld [vmem:[%s219 + $0x158] sm:$0xff]
      %v269 = vld [vmem:[%s219 + $0x160] sm:$0xff]
      %v270 = vld [vmem:[%s219 + $0x168] sm:$0xff]
      %v271 = vld [vmem:[%s219 + $0x170] sm:$0xff]
      %v272 = vld [vmem:[%s219 + $0x178] sm:$0xff]
      %v273 = vld [vmem:[%s1] sm:$0xff]
      %v274 = vld [vmem:[%s1 + $0x8] sm:$0xff]
      %v275 = vld [vmem:[%s1 + $0x10] sm:$0xff]
      %v276 = vld [vmem:[%s1 + $0x18] sm:$0xff]
      %v277 = vld [vmem:[%s1 + $0x20] sm:$0xff]
      %v278 = vld [vmem:[%s1 + $0x28] sm:$0xff]
      %v279 = vld [vmem:[%s1 + $0x30] sm:$0xff]
      %v280 = vld [vmem:[%s1 + $0x38] sm:$0xff]
      %v281 = vld [vmem:[%s1 + $0x40] sm:$0xff]
      %v282 = vld [vmem:[%s1 + $0x48] sm:$0xff]
      %v283 = vld [vmem:[%s1 + $0x50] sm:$0xff]
      %v284 = vld [vmem:[%s1 + $0x58] sm:$0xff]
      %v285 = vld [vmem:[%s219 + $0x180] sm:$0xff]
      %v286 = vld [vmem:[%s219 + $0x188] sm:$0xff]
      %v287 = vld [vmem:[%s219 + $0x190] sm:$0xff]
      %s288 = scalar_lea.vmem %s1, 96
      %v289 = vld [vmem:[%s288] sm:$0xff]
      %v290 = vld [vmem:[%s288 + $0x8] sm:$0xff]
      %v291 = vld [vmem:[%s288 + $0x10] sm:$0xff]
      %v292 = vld [vmem:[%s288 + $0x18] sm:$0xff]
      %v293 = vld [vmem:[%s288 + $0x20] sm:$0xff]
      %v294 = vld [vmem:[%s288 + $0x28] sm:$0xff]
      %v295 = vld [vmem:[%s288 + $0x30] sm:$0xff]
      %v296 = vld [vmem:[%s288 + $0x38] sm:$0xff]
      %v297 = vld [vmem:[%s288 + $0x40] sm:$0xff]
      %v298 = vld [vmem:[%s288 + $0x48] sm:$0xff]
      %v299 = vld [vmem:[%s288 + $0x50] sm:$0xff]
      %v300 = vld [vmem:[%s288 + $0x58] sm:$0xff]
      %vm301 = vcmask 785408
      %v303 = vsel %vm301, %v228, 0
      %v306 = vsel %vm301, %v229, 0
      %v309 = vsel %vm301, %v230, 0
      %v312 = vsel %vm301, %v231, 0
      %v315 = vsel %vm301, %v232, 0
      %v318 = vsel %vm301, %v233, 0
      %v321 = vsel %vm301, %v234, 0
      %v324 = vsel %vm301, %v235, 0
      %v327 = vsel %vm301, %v236, 0
      %v330 = vsel %vm301, %v237, 0
      %v333 = vsel %vm301, %v238, 0
      %v336 = vsel %vm301, %v239, 0
      %v339 = vsel %vm301, %v240, 0
      %v342 = vsel %vm301, %v241, 0
      %v345 = vsel %vm301, %v242, 0
      %v348 = vsel %vm301, %v243, 0
      %v351 = vsel %vm301, %v244, 0
      %v354 = vsel %vm301, %v245, 0
      %v357 = vsel %vm301, %v246, 0
      %v360 = vsel %vm301, %v247, 0
      %v363 = vsel %vm301, %v248, 0
      %v366 = vsel %vm301, %v249, 0
      %v369 = vsel %vm301, %v250, 0
      %v372 = vsel %vm301, %v251, 0
      %v375 = vsel %vm301, %v252, 0
      %v378 = vsel %vm301, %v253, 0
      %v381 = vsel %vm301, %v254, 0
      %v384 = vsel %vm301, %v255, 0
      %v387 = vsel %vm301, %v256, 0
      %v390 = vsel %vm301, %v257, 0
      %v393 = vsel %vm301, %v258, 0
      %v396 = vsel %vm301, %v259, 0
      %v399 = vsel %vm301, %v260, 0
      %v402 = vsel %vm301, %v261, 0
      %v405 = vsel %vm301, %v262, 0
      %v408 = vsel %vm301, %v263, 0
      %v411 = vsel %vm301, %v264, 0
      %v414 = vsel %vm301, %v265, 0
      %v417 = vsel %vm301, %v266, 0
      %v420 = vsel %vm301, %v267, 0
      %v423 = vsel %vm301, %v268, 0
      %v426 = vsel %vm301, %v269, 0
      %v429 = vsel %vm301, %v270, 0
      %v432 = vsel %vm301, %v271, 0
      %v435 = vsel %vm301, %v272, 0
      %v438 = vsel %vm301, %v285, 0
      %v441 = vsel %vm301, %v286, 0
      %v444 = vsel %vm301, %v287, 0
      %446 = vmatpush.msra.mxu0 0.0
      %447 = vmatpush.msra.mxu0 0.0
      %448 = vmatpush.msra.mxu0 0.0
      %449 = vmatpush.msra.mxu0 0.0
      %450 = vmatpush.msra.mxu0 %v300
      %451 = vmatpush.msra.mxu0 %v299
      %452 = vmatpush.msra.mxu0 %v298
      %453 = vmatpush.msra.mxu0 %v297
      %454 = vmatpush.msra.mxu0 %v296
      %455 = vmatpush.msra.mxu0 %v295
      %456 = vmatpush.msra.mxu0 %v294
      %457 = vmatpush.msra.mxu0 %v293
      %458 = vmatpush.msra.mxu0 %v292
      %459 = vmatpush.msra.mxu0 %v291
      %460 = vmatpush.msra.mxu0 %v290
      %461 = vmatpush.msra.mxu0 %v289
      %462 = vmatmul.f32.gmra.mxu0 %v303
      %v463 = vpop.f32.mrf.mxu0
      %v464 = vadd.f32 0.0, %v463
      %465 = vmatmul.f32.gmra.mxu0 %v306
      %v466 = vpop.f32.mrf.mxu0
      %v467 = vadd.f32 0.0, %v466
      %468 = vmatmul.f32.gmra.mxu0 %v309
      %v469 = vpop.f32.mrf.mxu0
      %v470 = vadd.f32 0.0, %v469
      %471 = vmatmul.f32.gmra.mxu0 %v312
      %v472 = vpop.f32.mrf.mxu0
      %v473 = vadd.f32 0.0, %v472
      %474 = vmatmul.f32.gmra.mxu0 %v315
      %v475 = vpop.f32.mrf.mxu0
      %v476 = vadd.f32 0.0, %v475
      %477 = vmatmul.f32.gmra.mxu0 %v318
      %v478 = vpop.f32.mrf.mxu0
      %v479 = vadd.f32 0.0, %v478
      %480 = vmatmul.f32.gmra.mxu0 %v321
      %v481 = vpop.f32.mrf.mxu0
      %v482 = vadd.f32 0.0, %v481
      %483 = vmatmul.f32.gmra.mxu0 %v324
      %v484 = vpop.f32.mrf.mxu0
      %v485 = vadd.f32 0.0, %v484
      %486 = vmatmul.f32.gmra.mxu0 %v327
      %v487 = vpop.f32.mrf.mxu0
      %v488 = vadd.f32 0.0, %v487
      %489 = vmatmul.f32.gmra.mxu0 %v330
      %v490 = vpop.f32.mrf.mxu0
      %v491 = vadd.f32 0.0, %v490
      %492 = vmatmul.f32.gmra.mxu0 %v333
      %v493 = vpop.f32.mrf.mxu0
      %v494 = vadd.f32 0.0, %v493
      %495 = vmatmul.f32.gmra.mxu0 %v336
      %v496 = vpop.f32.mrf.mxu0
      %v497 = vadd.f32 0.0, %v496
      %498 = vmatmul.f32.gmra.mxu0 %v339
      %v499 = vpop.f32.mrf.mxu0
      %v500 = vadd.f32 0.0, %v499
      %501 = vmatmul.f32.gmra.mxu0 %v342
      %v502 = vpop.f32.mrf.mxu0
      %v503 = vadd.f32 0.0, %v502
      %504 = vmatmul.f32.gmra.mxu0 %v345
      %v505 = vpop.f32.mrf.mxu0
      %v506 = vadd.f32 0.0, %v505
      %507 = vmatmul.f32.gmra.mxu0 %v348
      %v508 = vpop.f32.mrf.mxu0
      %v509 = vadd.f32 0.0, %v508
      %510 = vmatmul.f32.gmra.mxu0 %v351
      %v511 = vpop.f32.mrf.mxu0
      %v512 = vadd.f32 0.0, %v511
      %513 = vmatmul.f32.gmra.mxu0 %v354
      %v514 = vpop.f32.mrf.mxu0
      %v515 = vadd.f32 0.0, %v514
      %516 = vmatmul.f32.gmra.mxu0 %v357
      %v517 = vpop.f32.mrf.mxu0
      %v518 = vadd.f32 0.0, %v517
      %519 = vmatmul.f32.gmra.mxu0 %v360
      %v520 = vpop.f32.mrf.mxu0
      %v521 = vadd.f32 0.0, %v520
      %522 = vmatmul.f32.gmra.mxu0 %v363
      %v523 = vpop.f32.mrf.mxu0
      %v524 = vadd.f32 0.0, %v523
      %525 = vmatmul.f32.gmra.mxu0 %v366
      %v526 = vpop.f32.mrf.mxu0
      %v527 = vadd.f32 0.0, %v526
      %528 = vmatmul.f32.gmra.mxu0 %v369
      %v529 = vpop.f32.mrf.mxu0
      %v530 = vadd.f32 0.0, %v529
      %531 = vmatmul.f32.gmra.mxu0 %v372
      %v532 = vpop.f32.mrf.mxu0
      %v533 = vadd.f32 0.0, %v532
      %534 = vmatmul.f32.gmra.mxu0 %v375
      %v535 = vpop.f32.mrf.mxu0
      %v536 = vadd.f32 0.0, %v535
      %537 = vmatmul.f32.gmra.mxu0 %v378
      %v538 = vpop.f32.mrf.mxu0
      %v539 = vadd.f32 0.0, %v538
      %540 = vmatmul.f32.gmra.mxu0 %v381
      %v541 = vpop.f32.mrf.mxu0
      %v542 = vadd.f32 0.0, %v541
      %543 = vmatmul.f32.gmra.mxu0 %v384
      %v544 = vpop.f32.mrf.mxu0
      %v545 = vadd.f32 0.0, %v544
      %546 = vmatmul.f32.gmra.mxu0 %v387
      %v547 = vpop.f32.mrf.mxu0
      %v548 = vadd.f32 0.0, %v547
      %549 = vmatmul.f32.gmra.mxu0 %v390
      %v550 = vpop.f32.mrf.mxu0
      %v551 = vadd.f32 0.0, %v550
      %552 = vmatmul.f32.gmra.mxu0 %v393
      %v553 = vpop.f32.mrf.mxu0
      %v554 = vadd.f32 0.0, %v553
      %555 = vmatmul.f32.gmra.mxu0 %v396
      %v556 = vpop.f32.mrf.mxu0
      %v557 = vadd.f32 0.0, %v556
      %558 = vmatmul.f32.gmra.mxu0 %v399
      %v559 = vpop.f32.mrf.mxu0
      %v560 = vadd.f32 0.0, %v559
      %561 = vmatmul.f32.gmra.mxu0 %v402
      %v562 = vpop.f32.mrf.mxu0
      %v563 = vadd.f32 0.0, %v562
      %564 = vmatmul.f32.gmra.mxu0 %v405
      %v565 = vpop.f32.mrf.mxu0
      %v566 = vadd.f32 0.0, %v565
      %567 = vmatmul.f32.gmra.mxu0 %v408
      %v568 = vpop.f32.mrf.mxu0
      %v569 = vadd.f32 0.0, %v568
      %570 = vmatmul.f32.gmra.mxu0 %v411
      %v571 = vpop.f32.mrf.mxu0
      %v572 = vadd.f32 0.0, %v571
      %573 = vmatmul.f32.gmra.mxu0 %v414
      %v574 = vpop.f32.mrf.mxu0
      %v575 = vadd.f32 0.0, %v574
      %576 = vmatmul.f32.gmra.mxu0 %v417
      %v577 = vpop.f32.mrf.mxu0
      %v578 = vadd.f32 0.0, %v577
      %579 = vmatmul.f32.gmra.mxu0 %v420
      %v580 = vpop.f32.mrf.mxu0
      %v581 = vadd.f32 0.0, %v580
      %582 = vmatmul.f32.gmra.mxu0 %v423
      %v583 = vpop.f32.mrf.mxu0
      %v584 = vadd.f32 0.0, %v583
      %585 = vmatmul.f32.gmra.mxu0 %v426
      %v586 = vpop.f32.mrf.mxu0
      %v587 = vadd.f32 0.0, %v586
      %588 = vmatmul.f32.gmra.mxu0 %v429
      %v589 = vpop.f32.mrf.mxu0
      %v590 = vadd.f32 0.0, %v589
      %591 = vmatmul.f32.gmra.mxu0 %v432
      %v592 = vpop.f32.mrf.mxu0
      %v593 = vadd.f32 0.0, %v592
      %594 = vmatmul.f32.gmra.mxu0 %v435
      %v595 = vpop.f32.mrf.mxu0
      %v596 = vadd.f32 0.0, %v595
      %597 = vmatmul.f32.gmra.mxu0 %v438
      %v598 = vpop.f32.mrf.mxu0
      %v599 = vadd.f32 0.0, %v598
      %600 = vmatmul.f32.gmra.mxu0 %v441
      %v601 = vpop.f32.mrf.mxu0
      %v602 = vadd.f32 0.0, %v601
      %603 = vmatmul.f32.gmra.mxu0 %v444
      %v604 = vpop.f32.mrf.mxu0
      %v605 = vadd.f32 0.0, %v604
      %606 = vdwg.mxu0
      %v608 = vsel %vm301, %v225, 0
      %v611 = vsel %vm301, %v226, 0
      %v614 = vsel %vm301, %v227, 0
      %616 = vmatpush.msra.mxu0 0.0
      %617 = vmatpush.msra.mxu0 0.0
      %618 = vmatpush.msra.mxu0 0.0
      %619 = vmatpush.msra.mxu0 0.0
      %620 = vmatpush.msra.mxu0 %v284
      %621 = vmatpush.msra.mxu0 %v283
      %622 = vmatpush.msra.mxu0 %v282
      %623 = vmatpush.msra.mxu0 %v281
      %624 = vmatpush.msra.mxu0 %v280
      %625 = vmatpush.msra.mxu0 %v279
      %626 = vmatpush.msra.mxu0 %v278
      %627 = vmatpush.msra.mxu0 %v277
      %628 = vmatpush.msra.mxu0 %v276
      %629 = vmatpush.msra.mxu0 %v275
      %630 = vmatpush.msra.mxu0 %v274
      %631 = vmatpush.msra.mxu0 %v273
      %632 = vmatmul.f32.gmra.mxu0 %v608
      %v633 = vpop.f32.mrf.mxu0
      %v634 = vadd.f32 %v464, %v633
      %635 = vmatmul.f32.gmra.mxu0 %v611
      %v636 = vpop.f32.mrf.mxu0
      %v637 = vadd.f32 %v467, %v636
      %638 = vmatmul.f32.gmra.mxu0 %v614
      %v639 = vpop.f32.mrf.mxu0
      %v640 = vadd.f32 %v470, %v639
      %641 = vmatmul.f32.gmra.mxu0 %v303
      %v642 = vpop.f32.mrf.mxu0
      %v643 = vadd.f32 %v473, %v642
      %644 = vmatmul.f32.gmra.mxu0 %v306
      %v645 = vpop.f32.mrf.mxu0
      %v646 = vadd.f32 %v476, %v645
      %647 = vmatmul.f32.gmra.mxu0 %v309
      %v648 = vpop.f32.mrf.mxu0
      %v649 = vadd.f32 %v479, %v648
      %650 = vmatmul.f32.gmra.mxu0 %v312
      %v651 = vpop.f32.mrf.mxu0
      %v652 = vadd.f32 %v482, %v651
      %653 = vmatmul.f32.gmra.mxu0 %v315
      %v654 = vpop.f32.mrf.mxu0
      %v655 = vadd.f32 %v485, %v654
      %656 = vmatmul.f32.gmra.mxu0 %v318
      %v657 = vpop.f32.mrf.mxu0
      %v658 = vadd.f32 %v488, %v657
      %659 = vmatmul.f32.gmra.mxu0 %v321
      %v660 = vpop.f32.mrf.mxu0
      %v661 = vadd.f32 %v491, %v660
      %662 = vmatmul.f32.gmra.mxu0 %v324
      %v663 = vpop.f32.mrf.mxu0
      %v664 = vadd.f32 %v494, %v663
      %665 = vmatmul.f32.gmra.mxu0 %v327
      %v666 = vpop.f32.mrf.mxu0
      %v667 = vadd.f32 %v497, %v666
      %668 = vmatmul.f32.gmra.mxu0 %v330
      %v669 = vpop.f32.mrf.mxu0
      %v670 = vadd.f32 %v500, %v669
      %671 = vmatmul.f32.gmra.mxu0 %v333
      %v672 = vpop.f32.mrf.mxu0
      %v673 = vadd.f32 %v503, %v672
      %674 = vmatmul.f32.gmra.mxu0 %v336
      %v675 = vpop.f32.mrf.mxu0
      %v676 = vadd.f32 %v506, %v675
      %677 = vmatmul.f32.gmra.mxu0 %v339
      %v678 = vpop.f32.mrf.mxu0
      %v679 = vadd.f32 %v509, %v678
      %680 = vmatmul.f32.gmra.mxu0 %v342
      %v681 = vpop.f32.mrf.mxu0
      %v682 = vadd.f32 %v512, %v681
      %683 = vmatmul.f32.gmra.mxu0 %v345
      %v684 = vpop.f32.mrf.mxu0
      %v685 = vadd.f32 %v515, %v684
      %686 = vmatmul.f32.gmra.mxu0 %v348
      %v687 = vpop.f32.mrf.mxu0
      %v688 = vadd.f32 %v518, %v687
      %689 = vmatmul.f32.gmra.mxu0 %v351
      %v690 = vpop.f32.mrf.mxu0
      %v691 = vadd.f32 %v521, %v690
      %692 = vmatmul.f32.gmra.mxu0 %v354
      %v693 = vpop.f32.mrf.mxu0
      %v694 = vadd.f32 %v524, %v693
      %695 = vmatmul.f32.gmra.mxu0 %v357
      %v696 = vpop.f32.mrf.mxu0
      %v697 = vadd.f32 %v527, %v696
      %698 = vmatmul.f32.gmra.mxu0 %v360
      %v699 = vpop.f32.mrf.mxu0
      %v700 = vadd.f32 %v530, %v699
      %701 = vmatmul.f32.gmra.mxu0 %v363
      %v702 = vpop.f32.mrf.mxu0
      %v703 = vadd.f32 %v533, %v702
      %704 = vmatmul.f32.gmra.mxu0 %v366
      %v705 = vpop.f32.mrf.mxu0
      %v706 = vadd.f32 %v536, %v705
      %707 = vmatmul.f32.gmra.mxu0 %v369
      %v708 = vpop.f32.mrf.mxu0
      %v709 = vadd.f32 %v539, %v708
      %710 = vmatmul.f32.gmra.mxu0 %v372
      %v711 = vpop.f32.mrf.mxu0
      %v712 = vadd.f32 %v542, %v711
      %713 = vmatmul.f32.gmra.mxu0 %v375
      %v714 = vpop.f32.mrf.mxu0
      %v715 = vadd.f32 %v545, %v714
      %716 = vmatmul.f32.gmra.mxu0 %v378
      %v717 = vpop.f32.mrf.mxu0
      %v718 = vadd.f32 %v548, %v717
      %719 = vmatmul.f32.gmra.mxu0 %v381
      %v720 = vpop.f32.mrf.mxu0
      %v721 = vadd.f32 %v551, %v720
      %722 = vmatmul.f32.gmra.mxu0 %v384
      %v723 = vpop.f32.mrf.mxu0
      %v724 = vadd.f32 %v554, %v723
      %725 = vmatmul.f32.gmra.mxu0 %v387
      %v726 = vpop.f32.mrf.mxu0
      %v727 = vadd.f32 %v557, %v726
      %728 = vmatmul.f32.gmra.mxu0 %v390
      %v729 = vpop.f32.mrf.mxu0
      %v730 = vadd.f32 %v560, %v729
      %731 = vmatmul.f32.gmra.mxu0 %v393
      %v732 = vpop.f32.mrf.mxu0
      %v733 = vadd.f32 %v563, %v732
      %734 = vmatmul.f32.gmra.mxu0 %v396
      %v735 = vpop.f32.mrf.mxu0
      %v736 = vadd.f32 %v566, %v735
      %737 = vmatmul.f32.gmra.mxu0 %v399
      %v738 = vpop.f32.mrf.mxu0
      %v739 = vadd.f32 %v569, %v738
      %740 = vmatmul.f32.gmra.mxu0 %v402
      %v741 = vpop.f32.mrf.mxu0
      %v742 = vadd.f32 %v572, %v741
      %743 = vmatmul.f32.gmra.mxu0 %v405
      %v744 = vpop.f32.mrf.mxu0
      %v745 = vadd.f32 %v575, %v744
      %746 = vmatmul.f32.gmra.mxu0 %v408
      %v747 = vpop.f32.mrf.mxu0
      %v748 = vadd.f32 %v578, %v747
      %749 = vmatmul.f32.gmra.mxu0 %v411
      %v750 = vpop.f32.mrf.mxu0
      %v751 = vadd.f32 %v581, %v750
      %752 = vmatmul.f32.gmra.mxu0 %v414
      %v753 = vpop.f32.mrf.mxu0
      %v754 = vadd.f32 %v584, %v753
      %755 = vmatmul.f32.gmra.mxu0 %v417
      %v756 = vpop.f32.mrf.mxu0
      %v757 = vadd.f32 %v587, %v756
      %758 = vmatmul.f32.gmra.mxu0 %v420
      %v759 = vpop.f32.mrf.mxu0
      %v760 = vadd.f32 %v590, %v759
      %761 = vmatmul.f32.gmra.mxu0 %v423
      %v762 = vpop.f32.mrf.mxu0
      %v763 = vadd.f32 %v593, %v762
      %764 = vmatmul.f32.gmra.mxu0 %v426
      %v765 = vpop.f32.mrf.mxu0
      %v766 = vadd.f32 %v596, %v765
      %767 = vmatmul.f32.gmra.mxu0 %v429
      %v768 = vpop.f32.mrf.mxu0
      %v769 = vadd.f32 %v599, %v768
      %770 = vmatmul.f32.gmra.mxu0 %v432
      %v771 = vpop.f32.mrf.mxu0
      %v772 = vadd.f32 %v602, %v771
      %773 = vmatmul.f32.gmra.mxu0 %v435
      %v774 = vpop.f32.mrf.mxu0
      %v775 = vadd.f32 %v605, %v774
      %776 = vdwg.mxu0
      %v777 = vld [vmem:[%s219 + $0x30] sm:$0xff]
      %v778 = vld [vmem:[%s219 + $0x38] sm:$0xff]
      %v779 = vld [vmem:[%s219 + $0x40] sm:$0xff]
      %v780 = vld [vmem:[%s219 + $0x48] sm:$0xff]
      %v781 = vld [vmem:[%s219 + $0x50] sm:$0xff]
      %v782 = vld [vmem:[%s219 + $0x58] sm:$0xff]
      %v783 = vld [vmem:[%s219 + $0x60] sm:$0xff]
      %v784 = vld [vmem:[%s219 + $0x68] sm:$0xff]
      %v785 = vld [vmem:[%s219 + $0x70] sm:$0xff]
      %v786 = vld [vmem:[%s219 + $0x78] sm:$0xff]
      %v787 = vld [vmem:[%s219 + $0x80] sm:$0xff]
      %v788 = vld [vmem:[%s219 + $0x88] sm:$0xff]
      %v789 = vld [vmem:[%s219 + $0x90] sm:$0xff]
      %v790 = vld [vmem:[%s219 + $0x98] sm:$0xff]
      %v791 = vld [vmem:[%s219 + $0xa0] sm:$0xff]
      %v792 = vld [vmem:[%s219 + $0xa8] sm:$0xff]
      %v793 = vld [vmem:[%s219 + $0xb0] sm:$0xff]
      %v794 = vld [vmem:[%s219 + $0xb8] sm:$0xff]
      %v795 = vld [vmem:[%s219 + $0xc0] sm:$0xff]
      %v796 = vld [vmem:[%s219 + $0xc8] sm:$0xff]
      %v797 = vld [vmem:[%s219 + $0xd0] sm:$0xff]
      %v798 = vld [vmem:[%s219 + $0xd8] sm:$0xff]
      %v799 = vld [vmem:[%s219 + $0xe0] sm:$0xff]
      %v800 = vld [vmem:[%s219 + $0xe8] sm:$0xff]
      %v801 = vld [vmem:[%s219 + $0xf0] sm:$0xff]
      %v802 = vld [vmem:[%s219 + $0xf8] sm:$0xff]
      %v803 = vld [vmem:[%s219 + $0x100] sm:$0xff]
      %v804 = vld [vmem:[%s219 + $0x108] sm:$0xff]
      %v805 = vld [vmem:[%s219 + $0x110] sm:$0xff]
      %v806 = vld [vmem:[%s219 + $0x118] sm:$0xff]
      %v807 = vld [vmem:[%s219 + $0x120] sm:$0xff]
      %v808 = vld [vmem:[%s219 + $0x128] sm:$0xff]
      %v809 = vld [vmem:[%s219 + $0x130] sm:$0xff]
      %v810 = vld [vmem:[%s219 + $0x138] sm:$0xff]
      %v811 = vld [vmem:[%s219 + $0x140] sm:$0xff]
      %v812 = vld [vmem:[%s219 + $0x148] sm:$0xff]
      %v813 = vld [vmem:[%s219 + $0x150] sm:$0xff]
      %v814 = vld [vmem:[%s219 + $0x158] sm:$0xff]
      %v815 = vld [vmem:[%s219 + $0x160] sm:$0xff]
      %v816 = vld [vmem:[%s219 + $0x168] sm:$0xff]
      %v817 = vld [vmem:[%s219 + $0x170] sm:$0xff]
      %v818 = vld [vmem:[%s219 + $0x178] sm:$0xff]
      %v819 = vld [vmem:[%s219 + $0x180] sm:$0xff]
      %v820 = vld [vmem:[%s219 + $0x188] sm:$0xff]
      %v821 = vld [vmem:[%s219 + $0x190] sm:$0xff]
      %v822 = vld [vmem:[%s219 + $0x198] sm:$0xff]
      %v823 = vld [vmem:[%s219 + $0x1a0] sm:$0xff]
      %v824 = vld [vmem:[%s219 + $0x1a8] sm:$0xff]
      %s825 = scalar_lea.vmem %s1, 192
      %v826 = vld [vmem:[%s825] sm:$0xff]
      %v827 = vld [vmem:[%s825 + $0x8] sm:$0xff]
      %v828 = vld [vmem:[%s825 + $0x10] sm:$0xff]
      %v829 = vld [vmem:[%s825 + $0x18] sm:$0xff]
      %v830 = vld [vmem:[%s825 + $0x20] sm:$0xff]
      %v831 = vld [vmem:[%s825 + $0x28] sm:$0xff]
      %v832 = vld [vmem:[%s825 + $0x30] sm:$0xff]
      %v833 = vld [vmem:[%s825 + $0x38] sm:$0xff]
      %v834 = vld [vmem:[%s825 + $0x40] sm:$0xff]
      %v835 = vld [vmem:[%s825 + $0x48] sm:$0xff]
      %v836 = vld [vmem:[%s825 + $0x50] sm:$0xff]
      %v837 = vld [vmem:[%s825 + $0x58] sm:$0xff]
      %v839 = vsel %vm301, %v777, 0
      %v842 = vsel %vm301, %v778, 0
      %v845 = vsel %vm301, %v779, 0
      %v848 = vsel %vm301, %v780, 0
      %v851 = vsel %vm301, %v781, 0
      %v854 = vsel %vm301, %v782, 0
      %v857 = vsel %vm301, %v783, 0
      %v860 = vsel %vm301, %v784, 0
      %v863 = vsel %vm301, %v785, 0
      %v866 = vsel %vm301, %v786, 0
      %v869 = vsel %vm301, %v787, 0
      %v872 = vsel %vm301, %v788, 0
      %v875 = vsel %vm301, %v789, 0
      %v878 = vsel %vm301, %v790, 0
      %v881 = vsel %vm301, %v791, 0
      %v884 = vsel %vm301, %v792, 0
      %v887 = vsel %vm301, %v793, 0
      %v890 = vsel %vm301, %v794, 0
      %v893 = vsel %vm301, %v795, 0
      %v896 = vsel %vm301, %v796, 0
      %v899 = vsel %vm301, %v797, 0
      %v902 = vsel %vm301, %v798, 0
      %v905 = vsel %vm301, %v799, 0
      %v908 = vsel %vm301, %v800, 0
      %v911 = vsel %vm301, %v801, 0
      %v914 = vsel %vm301, %v802, 0
      %v917 = vsel %vm301, %v803, 0
      %v920 = vsel %vm301, %v804, 0
      %v923 = vsel %vm301, %v805, 0
      %v926 = vsel %vm301, %v806, 0
      %v929 = vsel %vm301, %v807, 0
      %v932 = vsel %vm301, %v808, 0
      %v935 = vsel %vm301, %v809, 0
      %v938 = vsel %vm301, %v810, 0
      %v941 = vsel %vm301, %v811, 0
      %v944 = vsel %vm301, %v812, 0
      %v947 = vsel %vm301, %v813, 0
      %v950 = vsel %vm301, %v814, 0
      %v953 = vsel %vm301, %v815, 0
      %v956 = vsel %vm301, %v816, 0
      %v959 = vsel %vm301, %v817, 0
      %v962 = vsel %vm301, %v818, 0
      %v965 = vsel %vm301, %v819, 0
      %v968 = vsel %vm301, %v820, 0
      %v971 = vsel %vm301, %v821, 0
      %v974 = vsel %vm301, %v822, 0
      %v977 = vsel %vm301, %v823, 0
      %v980 = vsel %vm301, %v824, 0
      %982 = vmatpush.msra.mxu0 0.0
      %983 = vmatpush.msra.mxu0 0.0
      %984 = vmatpush.msra.mxu0 0.0
      %985 = vmatpush.msra.mxu0 0.0
      %986 = vmatpush.msra.mxu0 %v837
      %987 = vmatpush.msra.mxu0 %v836
      %988 = vmatpush.msra.mxu0 %v835
      %989 = vmatpush.msra.mxu0 %v834
      %990 = vmatpush.msra.mxu0 %v833
      %991 = vmatpush.msra.mxu0 %v832
      %992 = vmatpush.msra.mxu0 %v831
      %993 = vmatpush.msra.mxu0 %v830
      %994 = vmatpush.msra.mxu0 %v829
      %995 = vmatpush.msra.mxu0 %v828
      %996 = vmatpush.msra.mxu0 %v827
      %997 = vmatpush.msra.mxu0 %v826
      %998 = vmatmul.f32.gmra.mxu0 %v839
      %v999 = vpop.f32.mrf.mxu0
      %v1000 = vadd.f32 0.0, %v999
      %1001 = vmatmul.f32.gmra.mxu0 %v842
      %v1002 = vpop.f32.mrf.mxu0
      %v1003 = vadd.f32 0.0, %v1002
      %1004 = vmatmul.f32.gmra.mxu0 %v845
      %v1005 = vpop.f32.mrf.mxu0
      %v1006 = vadd.f32 0.0, %v1005
      %1007 = vmatmul.f32.gmra.mxu0 %v848
      %v1008 = vpop.f32.mrf.mxu0
      %v1009 = vadd.f32 0.0, %v1008
      %1010 = vmatmul.f32.gmra.mxu0 %v851
      %v1011 = vpop.f32.mrf.mxu0
      %v1012 = vadd.f32 0.0, %v1011
      %1013 = vmatmul.f32.gmra.mxu0 %v854
      %v1014 = vpop.f32.mrf.mxu0
      %v1015 = vadd.f32 0.0, %v1014
      %1016 = vmatmul.f32.gmra.mxu0 %v857
      %v1017 = vpop.f32.mrf.mxu0
      %v1018 = vadd.f32 0.0, %v1017
      %1019 = vmatmul.f32.gmra.mxu0 %v860
      %v1020 = vpop.f32.mrf.mxu0
      %v1021 = vadd.f32 0.0, %v1020
      %1022 = vmatmul.f32.gmra.mxu0 %v863
      %v1023 = vpop.f32.mrf.mxu0
      %v1024 = vadd.f32 0.0, %v1023
      %1025 = vmatmul.f32.gmra.mxu0 %v866
      %v1026 = vpop.f32.mrf.mxu0
      %v1027 = vadd.f32 0.0, %v1026
      %1028 = vmatmul.f32.gmra.mxu0 %v869
      %v1029 = vpop.f32.mrf.mxu0
      %v1030 = vadd.f32 0.0, %v1029
      %1031 = vmatmul.f32.gmra.mxu0 %v872
      %v1032 = vpop.f32.mrf.mxu0
      %v1033 = vadd.f32 0.0, %v1032
      %1034 = vmatmul.f32.gmra.mxu0 %v875
      %v1035 = vpop.f32.mrf.mxu0
      %v1036 = vadd.f32 0.0, %v1035
      %1037 = vmatmul.f32.gmra.mxu0 %v878
      %v1038 = vpop.f32.mrf.mxu0
      %v1039 = vadd.f32 0.0, %v1038
      %1040 = vmatmul.f32.gmra.mxu0 %v881
      %v1041 = vpop.f32.mrf.mxu0
      %v1042 = vadd.f32 0.0, %v1041
      %1043 = vmatmul.f32.gmra.mxu0 %v884
      %v1044 = vpop.f32.mrf.mxu0
      %v1045 = vadd.f32 0.0, %v1044
      %1046 = vmatmul.f32.gmra.mxu0 %v887
      %v1047 = vpop.f32.mrf.mxu0
      %v1048 = vadd.f32 0.0, %v1047
      %1049 = vmatmul.f32.gmra.mxu0 %v890
      %v1050 = vpop.f32.mrf.mxu0
      %v1051 = vadd.f32 0.0, %v1050
      %1052 = vmatmul.f32.gmra.mxu0 %v893
      %v1053 = vpop.f32.mrf.mxu0
      %v1054 = vadd.f32 0.0, %v1053
      %1055 = vmatmul.f32.gmra.mxu0 %v896
      %v1056 = vpop.f32.mrf.mxu0
      %v1057 = vadd.f32 0.0, %v1056
      %1058 = vmatmul.f32.gmra.mxu0 %v899
      %v1059 = vpop.f32.mrf.mxu0
      %v1060 = vadd.f32 0.0, %v1059
      %1061 = vmatmul.f32.gmra.mxu0 %v902
      %v1062 = vpop.f32.mrf.mxu0
      %v1063 = vadd.f32 0.0, %v1062
      %1064 = vmatmul.f32.gmra.mxu0 %v905
      %v1065 = vpop.f32.mrf.mxu0
      %v1066 = vadd.f32 0.0, %v1065
      %1067 = vmatmul.f32.gmra.mxu0 %v908
      %v1068 = vpop.f32.mrf.mxu0
      %v1069 = vadd.f32 0.0, %v1068
      %1070 = vmatmul.f32.gmra.mxu0 %v911
      %v1071 = vpop.f32.mrf.mxu0
      %v1072 = vadd.f32 0.0, %v1071
      %1073 = vmatmul.f32.gmra.mxu0 %v914
      %v1074 = vpop.f32.mrf.mxu0
      %v1075 = vadd.f32 0.0, %v1074
      %1076 = vmatmul.f32.gmra.mxu0 %v917
      %v1077 = vpop.f32.mrf.mxu0
      %v1078 = vadd.f32 0.0, %v1077
      %1079 = vmatmul.f32.gmra.mxu0 %v920
      %v1080 = vpop.f32.mrf.mxu0
      %v1081 = vadd.f32 0.0, %v1080
      %1082 = vmatmul.f32.gmra.mxu0 %v923
      %v1083 = vpop.f32.mrf.mxu0
      %v1084 = vadd.f32 0.0, %v1083
      %1085 = vmatmul.f32.gmra.mxu0 %v926
      %v1086 = vpop.f32.mrf.mxu0
      %v1087 = vadd.f32 0.0, %v1086
      %1088 = vmatmul.f32.gmra.mxu0 %v929
      %v1089 = vpop.f32.mrf.mxu0
      %v1090 = vadd.f32 0.0, %v1089
      %1091 = vmatmul.f32.gmra.mxu0 %v932
      %v1092 = vpop.f32.mrf.mxu0
      %v1093 = vadd.f32 0.0, %v1092
      %1094 = vmatmul.f32.gmra.mxu0 %v935
      %v1095 = vpop.f32.mrf.mxu0
      %v1096 = vadd.f32 0.0, %v1095
      %1097 = vmatmul.f32.gmra.mxu0 %v938
      %v1098 = vpop.f32.mrf.mxu0
      %v1099 = vadd.f32 0.0, %v1098
      %1100 = vmatmul.f32.gmra.mxu0 %v941
      %v1101 = vpop.f32.mrf.mxu0
      %v1102 = vadd.f32 0.0, %v1101
      %1103 = vmatmul.f32.gmra.mxu0 %v944
      %v1104 = vpop.f32.mrf.mxu0
      %v1105 = vadd.f32 0.0, %v1104
      %1106 = vmatmul.f32.gmra.mxu0 %v947
      %v1107 = vpop.f32.mrf.mxu0
      %v1108 = vadd.f32 0.0, %v1107
      %1109 = vmatmul.f32.gmra.mxu0 %v950
      %v1110 = vpop.f32.mrf.mxu0
      %v1111 = vadd.f32 0.0, %v1110
      %1112 = vmatmul.f32.gmra.mxu0 %v953
      %v1113 = vpop.f32.mrf.mxu0
      %v1114 = vadd.f32 0.0, %v1113
      %1115 = vmatmul.f32.gmra.mxu0 %v956
      %v1116 = vpop.f32.mrf.mxu0
      %v1117 = vadd.f32 0.0, %v1116
      %1118 = vmatmul.f32.gmra.mxu0 %v959
      %v1119 = vpop.f32.mrf.mxu0
      %v1120 = vadd.f32 0.0, %v1119
      %1121 = vmatmul.f32.gmra.mxu0 %v962
      %v1122 = vpop.f32.mrf.mxu0
      %v1123 = vadd.f32 0.0, %v1122
      %1124 = vmatmul.f32.gmra.mxu0 %v965
      %v1125 = vpop.f32.mrf.mxu0
      %v1126 = vadd.f32 0.0, %v1125
      %1127 = vmatmul.f32.gmra.mxu0 %v968
      %v1128 = vpop.f32.mrf.mxu0
      %v1129 = vadd.f32 0.0, %v1128
      %1130 = vmatmul.f32.gmra.mxu0 %v971
      %v1131 = vpop.f32.mrf.mxu0
      %v1132 = vadd.f32 0.0, %v1131
      %1133 = vmatmul.f32.gmra.mxu0 %v974
      %v1134 = vpop.f32.mrf.mxu0
      %v1135 = vadd.f32 0.0, %v1134
      %1136 = vmatmul.f32.gmra.mxu0 %v977
      %v1137 = vpop.f32.mrf.mxu0
      %v1138 = vadd.f32 0.0, %v1137
      %1139 = vmatmul.f32.gmra.mxu0 %v980
      %v1140 = vpop.f32.mrf.mxu0
      %v1141 = vadd.f32 0.0, %v1140
      %1142 = vdwg.mxu0
      %v1143 = vadd.f32 %v634, %v1000
      %v1144 = vadd.f32 %v637, %v1003
      %v1145 = vadd.f32 %v640, %v1006
      %v1146 = vadd.f32 %v643, %v1009
      %v1147 = vadd.f32 %v646, %v1012
      %v1148 = vadd.f32 %v649, %v1015
      %v1149 = vadd.f32 %v652, %v1018
      %v1150 = vadd.f32 %v655, %v1021
      %v1151 = vadd.f32 %v658, %v1024
      %v1152 = vadd.f32 %v661, %v1027
      %v1153 = vadd.f32 %v664, %v1030
      %v1154 = vadd.f32 %v667, %v1033
      %v1155 = vadd.f32 %v670, %v1036
      %v1156 = vadd.f32 %v673, %v1039
      %v1157 = vadd.f32 %v676, %v1042
      %v1158 = vadd.f32 %v679, %v1045
      %v1159 = vadd.f32 %v682, %v1048
      %v1160 = vadd.f32 %v685, %v1051
      %v1161 = vadd.f32 %v688, %v1054
      %v1162 = vadd.f32 %v691, %v1057
      %v1163 = vadd.f32 %v694, %v1060
      %v1164 = vadd.f32 %v697, %v1063
      %v1165 = vadd.f32 %v700, %v1066
      %v1166 = vadd.f32 %v703, %v1069
      %v1167 = vadd.f32 %v706, %v1072
      %v1168 = vadd.f32 %v709, %v1075
      %v1169 = vadd.f32 %v712, %v1078
      %v1170 = vadd.f32 %v715, %v1081
      %v1171 = vadd.f32 %v718, %v1084
      %v1172 = vadd.f32 %v721, %v1087
      %v1173 = vadd.f32 %v724, %v1090
      %v1174 = vadd.f32 %v727, %v1093
      %v1175 = vadd.f32 %v730, %v1096
      %v1176 = vadd.f32 %v733, %v1099
      %v1177 = vadd.f32 %v736, %v1102
      %v1178 = vadd.f32 %v739, %v1105
      %v1179 = vadd.f32 %v742, %v1108
      %v1180 = vadd.f32 %v745, %v1111
      %v1181 = vadd.f32 %v748, %v1114
      %v1182 = vadd.f32 %v751, %v1117
      %v1183 = vadd.f32 %v754, %v1120
      %v1184 = vadd.f32 %v757, %v1123
      %v1185 = vadd.f32 %v760, %v1126
      %v1186 = vadd.f32 %v763, %v1129
      %v1187 = vadd.f32 %v766, %v1132
      %v1188 = vadd.f32 %v769, %v1135
      %v1189 = vadd.f32 %v772, %v1138
      %v1190 = vadd.f32 %v775, %v1141
      %v1191 = vld [vmem:[%s2] sm:$0x1]
      %v1193 = vperm.slane %v1191, 0
      %v1195 = vadd.f32 %v1143, %v1193
      %v1196 = vadd.f32 %v1144, %v1193
      %v1197 = vadd.f32 %v1145, %v1193
      %v1198 = vadd.f32 %v1146, %v1193
      %v1199 = vadd.f32 %v1147, %v1193
      %v1200 = vadd.f32 %v1148, %v1193
      %v1201 = vadd.f32 %v1149, %v1193
      %v1202 = vadd.f32 %v1150, %v1193
      %v1203 = vadd.f32 %v1151, %v1193
      %v1204 = vadd.f32 %v1152, %v1193
      %v1205 = vadd.f32 %v1153, %v1193
      %v1206 = vadd.f32 %v1154, %v1193
      %v1207 = vadd.f32 %v1155, %v1193
      %v1208 = vadd.f32 %v1156, %v1193
      %v1209 = vadd.f32 %v1157, %v1193
      %v1210 = vadd.f32 %v1158, %v1193
      %v1211 = vadd.f32 %v1159, %v1193
      %v1212 = vadd.f32 %v1160, %v1193
      %v1213 = vadd.f32 %v1161, %v1193
      %v1214 = vadd.f32 %v1162, %v1193
      %v1215 = vadd.f32 %v1163, %v1193
      %v1216 = vadd.f32 %v1164, %v1193
      %v1217 = vadd.f32 %v1165, %v1193
      %v1218 = vadd.f32 %v1166, %v1193
      %v1219 = vadd.f32 %v1167, %v1193
      %v1220 = vadd.f32 %v1168, %v1193
      %v1221 = vadd.f32 %v1169, %v1193
      %v1222 = vadd.f32 %v1170, %v1193
      %v1223 = vadd.f32 %v1171, %v1193
      %v1224 = vadd.f32 %v1172, %v1193
      %v1225 = vadd.f32 %v1173, %v1193
      %v1226 = vadd.f32 %v1174, %v1193
      %v1227 = vadd.f32 %v1175, %v1193
      %v1228 = vadd.f32 %v1176, %v1193
      %v1229 = vadd.f32 %v1177, %v1193
      %v1230 = vadd.f32 %v1178, %v1193
      %v1231 = vadd.f32 %v1179, %v1193
      %v1232 = vadd.f32 %v1180, %v1193
      %v1233 = vadd.f32 %v1181, %v1193
      %v1234 = vadd.f32 %v1182, %v1193
      %v1235 = vadd.f32 %v1183, %v1193
      %v1236 = vadd.f32 %v1184, %v1193
      %v1237 = vadd.f32 %v1185, %v1193
      %v1238 = vadd.f32 %v1186, %v1193
      %v1239 = vadd.f32 %v1187, %v1193
      %v1240 = vadd.f32 %v1188, %v1193
      %v1241 = vadd.f32 %v1189, %v1193
      %v1242 = vadd.f32 %v1190, %v1193
      %v1243 = vmax.f32 %v1195, 0.0
      %v1244 = vmax.f32 %v1196, 0.0
      %v1245 = vmax.f32 %v1197, 0.0
      %v1246 = vmax.f32 %v1198, 0.0
      %v1247 = vmax.f32 %v1199, 0.0
      %v1248 = vmax.f32 %v1200, 0.0
      %v1249 = vmax.f32 %v1201, 0.0
      %v1250 = vmax.f32 %v1202, 0.0
      %v1251 = vmax.f32 %v1203, 0.0
      %v1252 = vmax.f32 %v1204, 0.0
      %v1253 = vmax.f32 %v1205, 0.0
      %v1254 = vmax.f32 %v1206, 0.0
      %v1255 = vmax.f32 %v1207, 0.0
      %v1256 = vmax.f32 %v1208, 0.0
      %v1257 = vmax.f32 %v1209, 0.0
      %v1258 = vmax.f32 %v1210, 0.0
      %v1259 = vmax.f32 %v1211, 0.0
      %v1260 = vmax.f32 %v1212, 0.0
      %v1261 = vmax.f32 %v1213, 0.0
      %v1262 = vmax.f32 %v1214, 0.0
      %v1263 = vmax.f32 %v1215, 0.0
      %v1264 = vmax.f32 %v1216, 0.0
      %v1265 = vmax.f32 %v1217, 0.0
      %v1266 = vmax.f32 %v1218, 0.0
      %v1267 = vmax.f32 %v1219, 0.0
      %v1268 = vmax.f32 %v1220, 0.0
      %v1269 = vmax.f32 %v1221, 0.0
      %v1270 = vmax.f32 %v1222, 0.0
      %v1271 = vmax.f32 %v1223, 0.0
      %v1272 = vmax.f32 %v1224, 0.0
      %v1273 = vmax.f32 %v1225, 0.0
      %v1274 = vmax.f32 %v1226, 0.0
      %v1275 = vmax.f32 %v1227, 0.0
      %v1276 = vmax.f32 %v1228, 0.0
      %v1277 = vmax.f32 %v1229, 0.0
      %v1278 = vmax.f32 %v1230, 0.0
      %v1279 = vmax.f32 %v1231, 0.0
      %v1280 = vmax.f32 %v1232, 0.0
      %v1281 = vmax.f32 %v1233, 0.0
      %v1282 = vmax.f32 %v1234, 0.0
      %v1283 = vmax.f32 %v1235, 0.0
      %v1284 = vmax.f32 %v1236, 0.0
      %v1285 = vmax.f32 %v1237, 0.0
      %v1286 = vmax.f32 %v1238, 0.0
      %v1287 = vmax.f32 %v1239, 0.0
      %v1288 = vmax.f32 %v1240, 0.0
      %v1289 = vmax.f32 %v1241, 0.0
      %v1290 = vmax.f32 %v1242, 0.0
      %v1291 = vld [vmem:[%s3] sm:$0xff]
      %v1292 = vld [vmem:[%s3 + $0x8] sm:$0xff]
      %v1293 = vld [vmem:[%s3 + $0x10] sm:$0xff]
      %v1294 = vld [vmem:[%s3 + $0x18] sm:$0xff]
      %v1295 = vld [vmem:[%s4] sm:$0x1]
      %v1297 = vperm.slane %v1295, 0
      %vm1299 = vcmask 261120
      %v1301 = vsel %vm1299, %v1243, 0
      %v1304 = vsel %vm1299, %v1244, 0
      %v1307 = vsel %vm1299, %v1245, 0
      %v1310 = vsel %vm1299, %v1246, 0
      %v1313 = vsel %vm1299, %v1247, 0
      %v1316 = vsel %vm1299, %v1248, 0
      %v1319 = vsel %vm1299, %v1249, 0
      %v1322 = vsel %vm1299, %v1250, 0
      %v1325 = vsel %vm1299, %v1251, 0
      %v1328 = vsel %vm1299, %v1252, 0
      %v1331 = vsel %vm1299, %v1253, 0
      %v1334 = vsel %vm1299, %v1254, 0
      %v1337 = vsel %vm1299, %v1255, 0
      %v1340 = vsel %vm1299, %v1256, 0
      %v1343 = vsel %vm1299, %v1257, 0
      %v1346 = vsel %vm1299, %v1258, 0
      %v1349 = vsel %vm1299, %v1259, 0
      %v1352 = vsel %vm1299, %v1260, 0
      %v1355 = vsel %vm1299, %v1261, 0
      %v1358 = vsel %vm1299, %v1262, 0
      %v1361 = vsel %vm1299, %v1263, 0
      %v1364 = vsel %vm1299, %v1264, 0
      %v1367 = vsel %vm1299, %v1265, 0
      %v1370 = vsel %vm1299, %v1266, 0
      %v1373 = vsel %vm1299, %v1267, 0
      %v1376 = vsel %vm1299, %v1268, 0
      %v1379 = vsel %vm1299, %v1269, 0
      %v1382 = vsel %vm1299, %v1270, 0
      %v1385 = vsel %vm1299, %v1271, 0
      %v1388 = vsel %vm1299, %v1272, 0
      %v1391 = vsel %vm1299, %v1273, 0
      %v1394 = vsel %vm1299, %v1274, 0
      %v1397 = vsel %vm1299, %v1275, 0
      %v1400 = vsel %vm1299, %v1276, 0
      %v1403 = vsel %vm1299, %v1277, 0
      %v1406 = vsel %vm1299, %v1278, 0
      %v1409 = vsel %vm1299, %v1279, 0
      %v1412 = vsel %vm1299, %v1280, 0
      %v1415 = vsel %vm1299, %v1281, 0
      %v1418 = vsel %vm1299, %v1282, 0
      %v1421 = vsel %vm1299, %v1283, 0
      %v1424 = vsel %vm1299, %v1284, 0
      %v1427 = vsel %vm1299, %v1285, 0
      %v1430 = vsel %vm1299, %v1286, 0
      %v1433 = vsel %vm1299, %v1287, 0
      %v1436 = vsel %vm1299, %v1288, 0
      %v1439 = vsel %vm1299, %v1289, 0
      %v1442 = vsel %vm1299, %v1290, 0
      %1444 = vmatpush.msra.mxu0 0.0
      %1445 = vmatpush.msra.mxu0 0.0
      %1446 = vmatpush.msra.mxu0 0.0
      %1447 = vmatpush.msra.mxu0 0.0
      %1448 = vmatpush.msra.mxu0 0.0
      %1449 = vmatpush.msra.mxu0 0.0
      %1450 = vmatpush.msra.mxu0 0.0
      %1451 = vmatpush.msra.mxu0 0.0
      %1452 = vmatpush.msra.mxu0 0.0
      %1453 = vmatpush.msra.mxu0 0.0
      %1454 = vmatpush.msra.mxu0 0.0
      %1455 = vmatpush.msra.mxu0 0.0
      %1456 = vmatpush.msra.mxu0 %v1294
      %1457 = vmatpush.msra.mxu0 %v1293
      %1458 = vmatpush.msra.mxu0 %v1292
      %1459 = vmatpush.msra.mxu0 %v1291
      %1460 = vmatmul.f32.gmra.mxu0 %v1301
      %v1461 = vpop.f32.mrf.mxu0
      %v1462 = vadd.f32 %v1297, %v1461
      %1463 = vmatmul.f32.gmra.mxu0 %v1304
      %v1464 = vpop.f32.mrf.mxu0
      %v1465 = vadd.f32 %v1297, %v1464
      %1466 = vmatmul.f32.gmra.mxu0 %v1307
      %v1467 = vpop.f32.mrf.mxu0
      %v1468 = vadd.f32 %v1297, %v1467
      %1469 = vmatmul.f32.gmra.mxu0 %v1310
      %v1470 = vpop.f32.mrf.mxu0
      %v1471 = vadd.f32 %v1297, %v1470
      %1472 = vmatmul.f32.gmra.mxu0 %v1313
      %v1473 = vpop.f32.mrf.mxu0
      %v1474 = vadd.f32 %v1297, %v1473
      %1475 = vmatmul.f32.gmra.mxu0 %v1316
      %v1476 = vpop.f32.mrf.mxu0
      %v1477 = vadd.f32 %v1297, %v1476
      %1478 = vmatmul.f32.gmra.mxu0 %v1319
      %v1479 = vpop.f32.mrf.mxu0
      %v1480 = vadd.f32 %v1297, %v1479
      %1481 = vmatmul.f32.gmra.mxu0 %v1322
      %v1482 = vpop.f32.mrf.mxu0
      %v1483 = vadd.f32 %v1297, %v1482
      %1484 = vmatmul.f32.gmra.mxu0 %v1325
      %v1485 = vpop.f32.mrf.mxu0
      %v1486 = vadd.f32 %v1297, %v1485
      %1487 = vmatmul.f32.gmra.mxu0 %v1328
      %v1488 = vpop.f32.mrf.mxu0
      %v1489 = vadd.f32 %v1297, %v1488
      %1490 = vmatmul.f32.gmra.mxu0 %v1331
      %v1491 = vpop.f32.mrf.mxu0
      %v1492 = vadd.f32 %v1297, %v1491
      %1493 = vmatmul.f32.gmra.mxu0 %v1334
      %v1494 = vpop.f32.mrf.mxu0
      %v1495 = vadd.f32 %v1297, %v1494
      %1496 = vmatmul.f32.gmra.mxu0 %v1337
      %v1497 = vpop.f32.mrf.mxu0
      %v1498 = vadd.f32 %v1297, %v1497
      %1499 = vmatmul.f32.gmra.mxu0 %v1340
      %v1500 = vpop.f32.mrf.mxu0
      %v1501 = vadd.f32 %v1297, %v1500
      %1502 = vmatmul.f32.gmra.mxu0 %v1343
      %v1503 = vpop.f32.mrf.mxu0
      %v1504 = vadd.f32 %v1297, %v1503
      %1505 = vmatmul.f32.gmra.mxu0 %v1346
      %v1506 = vpop.f32.mrf.mxu0
      %v1507 = vadd.f32 %v1297, %v1506
      %1508 = vmatmul.f32.gmra.mxu0 %v1349
      %v1509 = vpop.f32.mrf.mxu0
      %v1510 = vadd.f32 %v1297, %v1509
      %1511 = vmatmul.f32.gmra.mxu0 %v1352
      %v1512 = vpop.f32.mrf.mxu0
      %v1513 = vadd.f32 %v1297, %v1512
      %1514 = vmatmul.f32.gmra.mxu0 %v1355
      %v1515 = vpop.f32.mrf.mxu0
      %v1516 = vadd.f32 %v1297, %v1515
      %1517 = vmatmul.f32.gmra.mxu0 %v1358
      %v1518 = vpop.f32.mrf.mxu0
      %v1519 = vadd.f32 %v1297, %v1518
      %1520 = vmatmul.f32.gmra.mxu0 %v1361
      %v1521 = vpop.f32.mrf.mxu0
      %v1522 = vadd.f32 %v1297, %v1521
      %1523 = vmatmul.f32.gmra.mxu0 %v1364
      %v1524 = vpop.f32.mrf.mxu0
      %v1525 = vadd.f32 %v1297, %v1524
      %1526 = vmatmul.f32.gmra.mxu0 %v1367
      %v1527 = vpop.f32.mrf.mxu0
      %v1528 = vadd.f32 %v1297, %v1527
      %1529 = vmatmul.f32.gmra.mxu0 %v1370
      %v1530 = vpop.f32.mrf.mxu0
      %v1531 = vadd.f32 %v1297, %v1530
      %1532 = vmatmul.f32.gmra.mxu0 %v1373
      %v1533 = vpop.f32.mrf.mxu0
      %v1534 = vadd.f32 %v1297, %v1533
      %1535 = vmatmul.f32.gmra.mxu0 %v1376
      %v1536 = vpop.f32.mrf.mxu0
      %v1537 = vadd.f32 %v1297, %v1536
      %1538 = vmatmul.f32.gmra.mxu0 %v1379
      %v1539 = vpop.f32.mrf.mxu0
      %v1540 = vadd.f32 %v1297, %v1539
      %1541 = vmatmul.f32.gmra.mxu0 %v1382
      %v1542 = vpop.f32.mrf.mxu0
      %v1543 = vadd.f32 %v1297, %v1542
      %1544 = vmatmul.f32.gmra.mxu0 %v1385
      %v1545 = vpop.f32.mrf.mxu0
      %v1546 = vadd.f32 %v1297, %v1545
      %1547 = vmatmul.f32.gmra.mxu0 %v1388
      %v1548 = vpop.f32.mrf.mxu0
      %v1549 = vadd.f32 %v1297, %v1548
      %1550 = vmatmul.f32.gmra.mxu0 %v1391
      %v1551 = vpop.f32.mrf.mxu0
      %v1552 = vadd.f32 %v1297, %v1551
      %1553 = vmatmul.f32.gmra.mxu0 %v1394
      %v1554 = vpop.f32.mrf.mxu0
      %v1555 = vadd.f32 %v1297, %v1554
      %1556 = vmatmul.f32.gmra.mxu0 %v1397
      %v1557 = vpop.f32.mrf.mxu0
      %v1558 = vadd.f32 %v1297, %v1557
      %1559 = vmatmul.f32.gmra.mxu0 %v1400
      %v1560 = vpop.f32.mrf.mxu0
      %v1561 = vadd.f32 %v1297, %v1560
      %1562 = vmatmul.f32.gmra.mxu0 %v1403
      %v1563 = vpop.f32.mrf.mxu0
      %v1564 = vadd.f32 %v1297, %v1563
      %1565 = vmatmul.f32.gmra.mxu0 %v1406
      %v1566 = vpop.f32.mrf.mxu0
      %v1567 = vadd.f32 %v1297, %v1566
      %1568 = vmatmul.f32.gmra.mxu0 %v1409
      %v1569 = vpop.f32.mrf.mxu0
      %v1570 = vadd.f32 %v1297, %v1569
      %1571 = vmatmul.f32.gmra.mxu0 %v1412
      %v1572 = vpop.f32.mrf.mxu0
      %v1573 = vadd.f32 %v1297, %v1572
      %1574 = vmatmul.f32.gmra.mxu0 %v1415
      %v1575 = vpop.f32.mrf.mxu0
      %v1576 = vadd.f32 %v1297, %v1575
      %1577 = vmatmul.f32.gmra.mxu0 %v1418
      %v1578 = vpop.f32.mrf.mxu0
      %v1579 = vadd.f32 %v1297, %v1578
      %1580 = vmatmul.f32.gmra.mxu0 %v1421
      %v1581 = vpop.f32.mrf.mxu0
      %v1582 = vadd.f32 %v1297, %v1581
      %1583 = vmatmul.f32.gmra.mxu0 %v1424
      %v1584 = vpop.f32.mrf.mxu0
      %v1585 = vadd.f32 %v1297, %v1584
      %1586 = vmatmul.f32.gmra.mxu0 %v1427
      %v1587 = vpop.f32.mrf.mxu0
      %v1588 = vadd.f32 %v1297, %v1587
      %1589 = vmatmul.f32.gmra.mxu0 %v1430
      %v1590 = vpop.f32.mrf.mxu0
      %v1591 = vadd.f32 %v1297, %v1590
      %1592 = vmatmul.f32.gmra.mxu0 %v1433
      %v1593 = vpop.f32.mrf.mxu0
      %v1594 = vadd.f32 %v1297, %v1593
      %1595 = vmatmul.f32.gmra.mxu0 %v1436
      %v1596 = vpop.f32.mrf.mxu0
      %v1597 = vadd.f32 %v1297, %v1596
      %1598 = vmatmul.f32.gmra.mxu0 %v1439
      %v1599 = vpop.f32.mrf.mxu0
      %v1600 = vadd.f32 %v1297, %v1599
      %1601 = vmatmul.f32.gmra.mxu0 %v1442
      %v1602 = vpop.f32.mrf.mxu0
      %v1603 = vadd.f32 %v1297, %v1602
      %1604 = vdwg.mxu0
      %vm1605 = vcmask 121856
      %1606 = vst.msk [vmem:[%s224] sm:$0xff] %vm1605, %v1462
      %1607 = vst.msk [vmem:[%s224 + $0x8] sm:$0xff] %vm1605, %v1465
      %1608 = vst.msk [vmem:[%s224 + $0x10] sm:$0xff] %vm1605, %v1468
      %1609 = vst.msk [vmem:[%s224 + $0x18] sm:$0xff] %vm1605, %v1471
      %1610 = vst.msk [vmem:[%s224 + $0x20] sm:$0xff] %vm1605, %v1474
      %1611 = vst.msk [vmem:[%s224 + $0x28] sm:$0xff] %vm1605, %v1477
      %1612 = vst.msk [vmem:[%s224 + $0x30] sm:$0xff] %vm1605, %v1480
      %1613 = vst.msk [vmem:[%s224 + $0x38] sm:$0xff] %vm1605, %v1483
      %1614 = vst.msk [vmem:[%s224 + $0x40] sm:$0xff] %vm1605, %v1486
      %1615 = vst.msk [vmem:[%s224 + $0x48] sm:$0xff] %vm1605, %v1489
      %1616 = vst.msk [vmem:[%s224 + $0x50] sm:$0xff] %vm1605, %v1492
      %1617 = vst.msk [vmem:[%s224 + $0x58] sm:$0xff] %vm1605, %v1495
      %1618 = vst.msk [vmem:[%s224 + $0x60] sm:$0xff] %vm1605, %v1498
      %1619 = vst.msk [vmem:[%s224 + $0x68] sm:$0xff] %vm1605, %v1501
      %1620 = vst.msk [vmem:[%s224 + $0x70] sm:$0xff] %vm1605, %v1504
      %1621 = vst.msk [vmem:[%s224 + $0x78] sm:$0xff] %vm1605, %v1507
      %1622 = vst.msk [vmem:[%s224 + $0x80] sm:$0xff] %vm1605, %v1510
      %1623 = vst.msk [vmem:[%s224 + $0x88] sm:$0xff] %vm1605, %v1513
      %1624 = vst.msk [vmem:[%s224 + $0x90] sm:$0xff] %vm1605, %v1516
      %1625 = vst.msk [vmem:[%s224 + $0x98] sm:$0xff] %vm1605, %v1519
      %1626 = vst.msk [vmem:[%s224 + $0xa0] sm:$0xff] %vm1605, %v1522
      %1627 = vst.msk [vmem:[%s224 + $0xa8] sm:$0xff] %vm1605, %v1525
      %1628 = vst.msk [vmem:[%s224 + $0xb0] sm:$0xff] %vm1605, %v1528
      %1629 = vst.msk [vmem:[%s224 + $0xb8] sm:$0xff] %vm1605, %v1531
      %1630 = vst.msk [vmem:[%s224 + $0xc0] sm:$0xff] %vm1605, %v1534
      %1631 = vst.msk [vmem:[%s224 + $0xc8] sm:$0xff] %vm1605, %v1537
      %1632 = vst.msk [vmem:[%s224 + $0xd0] sm:$0xff] %vm1605, %v1540
      %1633 = vst.msk [vmem:[%s224 + $0xd8] sm:$0xff] %vm1605, %v1543
      %1634 = vst.msk [vmem:[%s224 + $0xe0] sm:$0xff] %vm1605, %v1546
      %1635 = vst.msk [vmem:[%s224 + $0xe8] sm:$0xff] %vm1605, %v1549
      %1636 = vst.msk [vmem:[%s224 + $0xf0] sm:$0xff] %vm1605, %v1552
      %1637 = vst.msk [vmem:[%s224 + $0xf8] sm:$0xff] %vm1605, %v1555
      %1638 = vst.msk [vmem:[%s224 + $0x100] sm:$0xff] %vm1605, %v1558
      %1639 = vst.msk [vmem:[%s224 + $0x108] sm:$0xff] %vm1605, %v1561
      %1640 = vst.msk [vmem:[%s224 + $0x110] sm:$0xff] %vm1605, %v1564
      %1641 = vst.msk [vmem:[%s224 + $0x118] sm:$0xff] %vm1605, %v1567
      %1642 = vst.msk [vmem:[%s224 + $0x120] sm:$0xff] %vm1605, %v1570
      %1643 = vst.msk [vmem:[%s224 + $0x128] sm:$0xff] %vm1605, %v1573
      %1644 = vst.msk [vmem:[%s224 + $0x130] sm:$0xff] %vm1605, %v1576
      %1645 = vst.msk [vmem:[%s224 + $0x138] sm:$0xff] %vm1605, %v1579
      %1646 = vst.msk [vmem:[%s224 + $0x140] sm:$0xff] %vm1605, %v1582
      %1647 = vst.msk [vmem:[%s224 + $0x148] sm:$0xff] %vm1605, %v1585
      %1648 = vst.msk [vmem:[%s224 + $0x150] sm:$0xff] %vm1605, %v1588
      %1649 = vst.msk [vmem:[%s224 + $0x158] sm:$0xff] %vm1605, %v1591
      %1650 = vst.msk [vmem:[%s224 + $0x160] sm:$0xff] %vm1605, %v1594
      %1651 = vst.msk [vmem:[%s224 + $0x168] sm:$0xff] %vm1605, %v1597
      %1652 = vst.msk [vmem:[%s224 + $0x170] sm:$0xff] %vm1605, %v1600
      %1653 = vst.msk [vmem:[%s224 + $0x178] sm:$0xff] %vm1605, %v1603
      %p1654 = scmp.lt.s32.totalorder %s16, 1
      %s1655 = scalar_select %p1654, %s16, 1
      %s1656 = smul.addr %s1655, 48
      %s1657 = smul.addr %s1656, 8
      %s1658 = scalar_lea.vmem %s5, %s1657
      // Predicated region
      $region41: #{tpu_custom_call.1} parent=39 // pred_check
        %p1659 = pneg %p144
      $region42: #{tpu_custom_call.1} parent=39 // pred_check_branch
        %1661 = sbr.rel (%p1659) target = $region44
      $region43: #{tpu_custom_call.1} parent=39 // pred_region
        _
      $region44: #{tpu_custom_call.1} parent=39 // pred_fallthru
        _
    $region40: #{tpu_custom_call.1} parent=5 // pred_fallthru
      _
    %p1662 = scmp.le.s32.totalorder 2, %s11
    // Predicated region
    $region45: #{tpu_custom_call.1} parent=5 // pred_check
      %p1663 = pneg %p1662
    $region46: #{tpu_custom_call.1} parent=5 // pred_check_branch
      %1665 = sbr.rel (%p1663) target = $region48
    $region47: #{tpu_custom_call.1} parent=5 // pred_region
      %s1666 = ssub.s32 %s11, 2
      // Predicated region
      $region49: #{tpu_custom_call.1} parent=47 // pred_check
        %p1667 = pneg %p150
      $region50: #{tpu_custom_call.1} parent=47 // pred_check_branch
        %1669 = sbr.rel (%p1667) target = $region52
      $region51: #{tpu_custom_call.1} parent=47 // pred_region
        %p1670 = scmp.lt.s32.totalorder %s17, 1
        %s1671 = scalar_select %p1670, %s17, 1
        %s1672 = smul.addr %s1671, 48
        %s1673 = smul.addr %s1672, 8
        %s1674 = scalar_lea.vmem %s5, %s1673
      $region52: #{tpu_custom_call.1} parent=47 // pred_fallthru
        _
    $region48: #{tpu_custom_call.1} parent=5 // pred_fallthru
      _
  $region6: #{tpu_custom_call.1} parent=0 // loop_footer
    %s15 = sadd.s32 1, %s11
  $region7: #{tpu_custom_call.1} parent=0 // loop_footer_branch
    %10 = sbr.rel target = $region3
  $region8: #{tpu_custom_call.1} parent=0 // loop_exit
    _

</llo_original>
